<compile_context>
chip_gen: v7x
topology: tpu7x:2x2x1
jax: 0.10.0
libtpu: 0.0.40
codegen_flags: <defaults>
</compile_context>

<pallas_src>
import math
from functools import partial

import jax
import jax.numpy as jnp
from jax.experimental import pallas as pl
from jax.experimental.pallas import tpu as pltpu


def _round_up(v, m):
    return pl.cdiv(v, m) * m


def _build_slab(x, *, min_deg, max_deg, use_identity):
    """x: (x_dim, C) f32 -> (latent_dim, C) f32 slab in the module's row order.

    Rows: [identity (if enabled)] ++ [sin(x*2^d)] ++ [sin(x*2^d + pi/2)], d-major.
    Built with sublane-axis concats of full 128-lane rows (cheap), so the single
    jnp.sin below runs on a dense (2*num_deg*x_dim, C) slab.
    """
    xb = jnp.concatenate(
        [x * jnp.float32(2.0 ** d) for d in range(min_deg, max_deg)], axis=0
    )                                                        # (num_deg*x_dim, C)
    xb_all = jnp.concatenate([xb, xb + jnp.float32(0.5 * math.pi)], axis=0)
    trig = jnp.sin(xb_all)                                   # ONE EUP pass
    if use_identity:
        return jnp.concatenate([x, trig], axis=0)            # (latent_dim, C)
    return trig


def _kernel_channel_last(xt_ref, proj_ref, o_ref, *, min_deg, max_deg, use_identity):
    """xt_ref: (x_dim, C); proj_ref: (latent_dim, latent_dim) identity;
    o_ref: (C, latent_dim) channel-last block written directly (no XLA transpose)."""
    x = xt_ref[...].astype(jnp.float32)
    slab = _build_slab(x, min_deg=min_deg, max_deg=max_deg, use_identity=use_identity)
    # In-kernel transpose on the idle MXU: out[p, o] = sum_c slab[c, p] * I[c, o].
    # HIGHEST precision keeps the pass-through exact to ~1 ulp in f32.
    out = jax.lax.dot_general(
        slab, proj_ref[...],
        dimension_numbers=(((0,), (0,)), ((), ())),
        precision=jax.lax.Precision.HIGHEST,
        preferred_element_type=jnp.float32,
    )                                                        # (C, latent_dim)
    o_ref[...] = out.astype(o_ref.dtype)                     # one aligned full-block store


def _kernel_channel_first(xt_ref, o_ref, *, min_deg, max_deg, use_identity):
    """xt_ref: (x_dim, C); o_ref: (latent_dim, C) lane-dense channel-first block."""
    x = xt_ref[...].astype(jnp.float32)
    slab = _build_slab(x, min_deg=min_deg, max_deg=max_deg, use_identity=use_identity)
    o_ref[...] = slab.astype(o_ref.dtype)                    # one aligned full-block store


def sinusoidal_encode(x, min_deg, max_deg, use_identity=True, *,
                      tile_cols=8192, channel_first=False):
    """Pallas implementation of SinusoidalEncoder.forward.

    x: [..., x_dim].
    channel_first=False (default, module semantics): returns [..., latent_dim].
    channel_first=True: returns [latent_dim, ...] with no transposes anywhere
    (preferred when the consumer can contract over the channel-first layout).
    """
    if max_deg == min_deg:
        return x

    x_dim = x.shape[-1]
    num_deg = max_deg - min_deg
    latent_dim = (int(use_identity) + 2 * num_deg) * x_dim

    lead_shape = x.shape[:-1]
    n_pts = math.prod(lead_shape) if lead_shape else 1

    # Lane-dense transposed input slab: channels on sublanes, points on lanes.
    # (x_dim is tiny, so this XLA transpose is a minor cost; per review, do NOT
    # replace it with in-kernel (tc, x_dim) loads, which would be 3/128-lane dense.)
    xt = x.reshape(n_pts, x_dim).T                           # (x_dim, n_pts)

    # Block width: multiple of 128, no bigger than the (padded) problem, and
    # capped so the parallel grid has >= 2 steps when possible (v7x: 2 TCs).
    tc = min(int(tile_cols), _round_up(n_pts, 128))
    if n_pts > 128:
        tc = min(tc, _round_up(pl.cdiv(n_pts, 2), 128))
    tc = max(tc, 128)
    grid = (pl.cdiv(n_pts, tc),)

    itemsize = jnp.dtype(x.dtype).itemsize
    cost = pl.CostEstimate(
        flops=2 * num_deg * x_dim * n_pts
        + (0 if channel_first else 2 * latent_dim * latent_dim * n_pts),
        transcendentals=2 * num_deg * x_dim * n_pts,
        bytes_accessed=(x_dim + latent_dim) * n_pts * itemsize,
    )
    cparams = pltpu.CompilerParams(
        dimension_semantics=("parallel",),
        vmem_limit_bytes=32 * 1024 * 1024,   # lifts v5e's 16 MiB default; safe on v7x
    )

    if channel_first:
        kernel = partial(_kernel_channel_first, min_deg=min_deg, max_deg=max_deg,
                         use_identity=use_identity)
        out = pl.pallas_call(
            kernel,
            out_shape=jax.ShapeDtypeStruct((latent_dim, n_pts), x.dtype),
            grid_spec=pltpu.PrefetchScalarGridSpec(
                num_scalar_prefetch=0,
                grid=grid,
                in_specs=[pl.BlockSpec((x_dim, tc), lambda i: (0, i))],
                out_specs=pl.BlockSpec((latent_dim, tc), lambda i: (0, i)),
            ),
            compiler_params=cparams,
            cost_estimate=cost,
        )(xt)
        return out.reshape(latent_dim, *lead_shape)          # free reshape

    proj = jnp.eye(latent_dim, dtype=jnp.float32)            # in-kernel transpose matrix
    kernel = partial(_kernel_channel_last, min_deg=min_deg, max_deg=max_deg,
                     use_identity=use_identity)
    out = pl.pallas_call(
        kernel,
        out_shape=jax.ShapeDtypeStruct((n_pts, latent_dim), x.dtype),
        grid_spec=pltpu.PrefetchScalarGridSpec(
            num_scalar_prefetch=0,
            grid=grid,
            in_specs=[pl.BlockSpec((x_dim, tc), lambda i: (0, i)),
                      pl.BlockSpec((latent_dim, latent_dim), lambda i: (0, 0))],
            out_specs=pl.BlockSpec((tc, latent_dim), lambda i: (i, 0)),
        ),
        compiler_params=cparams,
        cost_estimate=cost,
    )(xt, proj)
    return out.reshape(*lead_shape, latent_dim)              # free reshape, no transpose


def sinusoidal_encode_ref(x, min_deg, max_deg, use_identity=True):
    """Pure-JAX reference mirroring the PyTorch forward exactly."""
    if max_deg == min_deg:
        return x
    scales = jnp.array([2.0 ** i for i in range(min_deg, max_deg)], dtype=x.dtype)
    xb = (x[..., None, :] * scales[:, None]).reshape(
        *x.shape[:-1], (max_deg - min_deg) * x.shape[-1]
    )
    latent = jnp.sin(jnp.concatenate([xb, xb + 0.5 * math.pi], axis=-1))
    if use_identity:
        latent = jnp.concatenate([x, latent], axis=-1)
    return latent


if __name__ == "__main__":
    # NeRF-style config: 3-D points, degrees [0, 4), with identity.
    x_dim, min_deg, max_deg, use_identity = 3, 0, 4, True
    key = jax.random.PRNGKey(0)
    # batch=2, rays=100 (non-multiple of 128 to exercise the ragged last block).
    x = jax.random.normal(key, (2, 100, x_dim), dtype=jnp.float32)

    latent_dim = (int(use_identity) + (max_deg - min_deg) * 2) * x_dim

    # Default path: module semantics, channel-last output written by the kernel.
    out = jax.block_until_ready(sinusoidal_encode(x, min_deg, max_deg, use_identity))
    ref = sinusoidal_encode_ref(x, min_deg, max_deg, use_identity)
    assert out.shape == (2, 100, latent_dim), out.shape
    assert out.dtype == x.dtype
    assert jnp.allclose(out, ref, atol=1e-5, rtol=1e-5)

    # Second config: no identity, shifted degree range.
    out2 = jax.block_until_ready(sinusoidal_encode(x, 1, 5, use_identity=False))
    ref2 = sinusoidal_encode_ref(x, 1, 5, use_identity=False)
    assert out2.shape == (2, 100, 2 * 4 * x_dim), out2.shape
    assert jnp.allclose(out2, ref2, atol=1e-5, rtol=1e-5)

    # Channel-first path (transpose-free slab for fused consumers).
    out3 = jax.block_until_ready(
        sinusoidal_encode(x, min_deg, max_deg, use_identity, channel_first=True))
    ref3 = jnp.moveaxis(ref, -1, 0)
    assert out3.shape == (latent_dim, 2, 100), out3.shape
    assert jnp.allclose(out3, ref3, atol=1e-5, rtol=1e-5)

    print("KERNEL_OK")
</pallas_src>

<mosaic_0001>
module attributes {stable_mosaic.version = 11 : i64} {
  func.func @_kernel_channel_last(%arg0: i32, %arg1: memref<3x128xf32, #tpu.memory_space<vmem>>, %arg2: memref<27x27xf32, #tpu.memory_space<vmem>>, %arg3: memref<128x27xf32, #tpu.memory_space<vmem>>) attributes {dimension_semantics = [#tpu.dimension_semantics<parallel>], iteration_bounds = array<i64: 2>, scalar_prefetch = 0 : i64, scratch_operands = 0 : i64, tpu.core_type = #tpu.core_type<tc>, window_params = [{transform_indices = @transform_0, window_bounds = array<i64: 3, 128>}, {pipeline_mode = #tpu.pipeline_mode<synchronous>, transform_indices = @transform_1, window_bounds = array<i64: 27, 27>}, {transform_indices = @transform_2, window_bounds = array<i64: 128, 27>}]} {
    %c0 = arith.constant 0 : index
    %c0_0 = arith.constant 0 : index
    %0 = vector.load %arg1[%c0, %c0_0] : memref<3x128xf32, #tpu.memory_space<vmem>>, vector<3x128xf32>
    %cst = arith.constant 1.000000e+00 : f32
    %1 = vector.broadcast %cst : f32 to vector<3x128xf32>
    %2 = arith.mulf %0, %1 : vector<3x128xf32>
    %cst_1 = arith.constant 2.000000e+00 : f32
    %3 = vector.broadcast %cst_1 : f32 to vector<3x128xf32>
    %4 = arith.mulf %0, %3 : vector<3x128xf32>
    %cst_2 = arith.constant 4.000000e+00 : f32
    %5 = vector.broadcast %cst_2 : f32 to vector<3x128xf32>
    %6 = arith.mulf %0, %5 : vector<3x128xf32>
    %cst_3 = arith.constant 8.000000e+00 : f32
    %7 = vector.broadcast %cst_3 : f32 to vector<3x128xf32>
    %8 = arith.mulf %0, %7 : vector<3x128xf32>
    %9 = tpu.concatenate %2, %4, %6, %8 in 0 : vector<3x128xf32>, vector<3x128xf32>, vector<3x128xf32>, vector<3x128xf32> -> vector<12x128xf32>
    %cst_4 = arith.constant 1.57079637 : f32
    %10 = vector.broadcast %cst_4 : f32 to vector<12x128xf32>
    %11 = arith.addf %9, %10 : vector<12x128xf32>
    %12 = tpu.concatenate %9, %11 in 0 : vector<12x128xf32>, vector<12x128xf32> -> vector<24x128xf32>
    %13 = math.sin %12 : vector<24x128xf32>
    %14 = tpu.concatenate %0, %13 in 0 : vector<3x128xf32>, vector<24x128xf32> -> vector<27x128xf32>
    %c0_5 = arith.constant 0 : index
    %c0_6 = arith.constant 0 : index
    %15 = vector.load %arg2[%c0_5, %c0_6] : memref<27x27xf32, #tpu.memory_space<vmem>>, vector<27x27xf32>
    %cst_7 = arith.constant dense<0.000000e+00> : vector<128x27xf32>
    %16 = tpu.matmul %14, %15, %cst_7 {dimension_numbers = #tpu.dot_dimension_numbers<[0], [0], [1], [1], [0, 1, 1, 1], [], []>, precision = #tpu.contract_precision<fp32>} : vector<27x128xf32>, vector<27x27xf32>, vector<128x27xf32> -> vector<128x27xf32>
    %c0_8 = arith.constant 0 : index
    %c0_9 = arith.constant 0 : index
    %17 = vector.load %arg3[%c0_8, %c0_9] : memref<128x27xf32, #tpu.memory_space<vmem>>, vector<128x27xf32>
    tpu.vector_store %arg3[%c0_8, %c0_9], %16 {strides = array<i32>} : memref<128x27xf32, #tpu.memory_space<vmem>>, vector<128x27xf32>,
    return
  }
  func.func @transform_0(%arg0: i32) -> (i32, i32) {
    %c0_i32 = arith.constant 0 : i32
    %c0_i32_0 = arith.constant 0 : i32
    return %c0_i32, %arg0 : i32, i32
  }
  func.func @transform_1(%arg0: i32) -> (i32, i32) {
    %c0_i32 = arith.constant 0 : i32
    %c0_i32_0 = arith.constant 0 : i32
    %c0_i32_1 = arith.constant 0 : i32
    return %c0_i32, %c0_i32_0 : i32, i32
  }
  func.func @transform_2(%arg0: i32) -> (i32, i32) {
    %c0_i32 = arith.constant 0 : i32
    %c0_i32_0 = arith.constant 0 : i32
    return %arg0, %c0_i32 : i32, i32
  }
}

</mosaic_0001>

<llo_original>
// kernel: tpu_custom_call.1
$region0: #{tpu_custom_call.1}
  #allocation0 [shape = 'u32[]', space=smem, size = 0x4, offset = 0x4, fixed_abs, tag = 'smem constant byte address 0x4 - core index']
  #allocation1 [shape = 'u32[144,128]{1,0:T(1,128)}', space=vmem, size = 0x12000, scoped, tag = 'internal scratch']
  %s0 = inlined_call_operand.hbm [shape: f32[3,200], index: 0, kind: input, shape index: {}]
  %s1 = inlined_call_operand.hbm [shape: f32[27,27], index: 1, kind: input, shape index: {}]
  %s2 = inlined_call_operand.vmem [shape: f32[200,27], index: 2, kind: output, shape index: {}]
  %s3 = sld [smem:[#allocation0]]
  $region97: #{tpu_custom_call.1} parent=0
    _
  %s5 = ssub.s32 1, %s3
  %s6 = scalar_select 0, %s5, %s3
  $region1: #{tpu_custom_call.1} parent=0
    #allocation2 [shape = 'u8[4096]{0}', space=vmem, size = 0x1000, scoped, tag = 'input window, operand 0']
    #allocation3 [shape = 's32[2]{0}', space=sflag, size = 0x8, scoped, tag = 'scoped memory for tpu_custom_call.1']
    #allocation4 [shape = 'u8[16384]{0}', space=vmem, size = 0x4000, scoped, tag = 'input window, operand 1, single buffered']
    #allocation5 [shape = 's32[1]{0}', space=sflag, size = 0x4, scoped, tag = 'scoped memory for tpu_custom_call.1']
    #allocation6 [shape = 'u8[131072]{0}', space=vmem, size = 0x20000, scoped, tag = 'output window, operand 0']
    %7 = vsyncpa [#allocation3], 0
    %s8 = scalar_lea.sflag [#allocation3], 1
    %9 = vsyncpa %s8, 0
    %10 = vsyncpa [#allocation5], 0
    loop: start=0, step=1, limit=4
    $region2: #{tpu_custom_call.1} parent=1 // loop_pre_header
      _
    $region3: #{tpu_custom_call.1} parent=1 // loop_header
      %s12 = sphi 0, %s16
      %p13 = scmp.ge.s32.totalorder %s12, 4
      %s22 = sphi 0, %s24
      %s25 = sphi 0, %s22
      %s26 = sphi 0, %s25
      %s42 = sphi 0, %s26
      %s46 = sphi 0, %s46
      %s48 = sphi 0, %s46
      %s49 = sphi 0, %s48
      %s63 = sphi 0, %s49
      %s69 = sphi 0, %s71
      %s72 = sphi 0, %s69
      %s73 = sphi 0, %s72
      %s89 = sphi 0, %s73
    $region4: #{tpu_custom_call.1} parent=1 // loop_header_branch
      %15 = sbr.rel (%p13) target = $region8
    $region5: #{tpu_custom_call.1} parent=1 // loop_body
      %s17 = ssub.s32 %s12, 1
      %s18 = ssub.s32 %s12, 2
      %s19 = sadd.s32 %s12, 1
      %s20 = ssub.s32 %s12, %s19
      %p21 = scmp.eq.s32.totalorder %s20, 0
      %s23 = sadd.s32 %s22, 1
      %s24 = scalar_select %p21, %s22, %s23
      %p27 = pneg %p21
      %p28 = scmp.eq.s32.totalorder %s12, 1
      %p29 = por %p27, %p28
      %p30 = scmp.ne.s32.totalorder %s22, %s25
      %p31 = scmp.eq.s32.totalorder %s12, 0
      %p32 = por %p30, %p31
      %p33 = scmp.ne.s32.totalorder %s22, %s25
      %p34 = scmp.eq.s32.totalorder %s17, 1
      %p35 = por %p33, %p34
      %p36 = scmp.ne.s32.totalorder %s25, %s26
      %p37 = scmp.eq.s32.totalorder %s17, 0
      %p38 = por %p36, %p37
      %p39 = scmp.ne.s32.totalorder %s25, %s26
      %p40 = scmp.eq.s32.totalorder %s18, 1
      %p41 = por %p39, %p40
      %p43 = scmp.ne.s32.totalorder %s26, %s42
      %p44 = scmp.eq.s32.totalorder %s18, 0
      %p45 = por %p43, %p44
      %s47 = sadd.s32 %s46, 1
      %p50 = scmp.eq.s32.totalorder %s12, 1
      %p51 = scmp.ne.s32.totalorder %s46, %s48
      %p52 = scmp.eq.s32.totalorder %s12, 0
      %p53 = por %p51, %p52
      %p54 = scmp.ne.s32.totalorder %s46, %s48
      %p55 = scmp.eq.s32.totalorder %s17, 1
      %p56 = por %p54, %p55
      %p57 = scmp.ne.s32.totalorder %s48, %s49
      %p58 = scmp.eq.s32.totalorder %s17, 0
      %p59 = por %p57, %p58
      %p60 = scmp.ne.s32.totalorder %s48, %s49
      %p61 = scmp.eq.s32.totalorder %s18, 1
      %p62 = por %p60, %p61
      %p64 = scmp.ne.s32.totalorder %s49, %s63
      %p65 = scmp.eq.s32.totalorder %s18, 0
      %p66 = por %p64, %p65
      %s67 = ssub.s32 %s12, %s19
      %p68 = scmp.eq.s32.totalorder %s67, 0
      %s70 = sadd.s32 %s69, 1
      %s71 = scalar_select %p68, %s69, %s70
      %p74 = pneg %p68
      %p75 = scmp.eq.s32.totalorder %s12, 1
      %p76 = por %p74, %p75
      %p77 = scmp.ne.s32.totalorder %s69, %s72
      %p78 = scmp.eq.s32.totalorder %s12, 0
      %p79 = por %p77, %p78
      %p80 = scmp.ne.s32.totalorder %s69, %s72
      %p81 = scmp.eq.s32.totalorder %s17, 1
      %p82 = por %p80, %p81
      %p83 = scmp.ne.s32.totalorder %s72, %s73
      %p84 = scmp.eq.s32.totalorder %s17, 0
      %p85 = por %p83, %p84
      %p86 = scmp.ne.s32.totalorder %s72, %s73
      %p87 = scmp.eq.s32.totalorder %s18, 1
      %p88 = por %p86, %p87
      %p90 = scmp.ne.s32.totalorder %s73, %s89
      %p91 = scmp.eq.s32.totalorder %s18, 0
      %p92 = por %p90, %p91
      %p93 = scmp.le.s32.totalorder 1, %s12
      %p94 = scmp.lt.s32.totalorder %s12, 3
      %p95 = pnand %p93, %p94
      %p96 = pneg %p95
      // Predicated region
      $region9: #{tpu_custom_call.1} parent=5 // pred_check
        _
      $region10: #{tpu_custom_call.1} parent=5 // pred_check_branch
        %98 = sbr.rel (%p95) target = $region12
      $region11: #{tpu_custom_call.1} parent=5 // pred_region
        %s99 = ssub.s32 %s12, 1
        // Predicated region
        $region13: #{tpu_custom_call.1} parent=11 // pred_check
          %p100 = pneg %p59
        $region14: #{tpu_custom_call.1} parent=11 // pred_check_branch
          %102 = sbr.rel (%p100) target = $region16
        $region15: #{tpu_custom_call.1} parent=11 // pred_region
          %s104 = ssub.s32 512, 512
          %105 = vsyncadd [#allocation5], %s104
          %s106 = sshll.u32 [#allocation4], 4
          %s107 = int_to_ptr.vmem [resolvable:$true] %s106
          %112 = dma.hbm_to_vmem [thread:$0]  %s1, 512, %s107, [#allocation5], 128, 128, 8
        $region16: #{tpu_custom_call.1} parent=11 // pred_fallthru
          _
      $region12: #{tpu_custom_call.1} parent=5 // pred_fallthru
        _
      %p113 = scmp.lt.s32.totalorder %s12, 2
      // Predicated region
      $region17: #{tpu_custom_call.1} parent=5 // pred_check
        %p114 = pneg %p113
      $region18: #{tpu_custom_call.1} parent=5 // pred_check_branch
        %116 = sbr.rel (%p114) target = $region20
      $region19: #{tpu_custom_call.1} parent=5 // pred_region
        // Predicated region
        $region21: #{tpu_custom_call.1} parent=19 // pred_check
          %p117 = pneg %p32
        $region22: #{tpu_custom_call.1} parent=19 // pred_check_branch
          %119 = sbr.rel (%p117) target = $region24
        $region23: #{tpu_custom_call.1} parent=19 // pred_region
          %s120 = sand.u32 %s22, 1
          %s121 = scalar_lea.sflag [#allocation3], %s120
          %s122 = sand.u32 %s22, 1
          %s123 = smul.addr %s122, 4
          %s124 = scalar_lea.vmem [#allocation2], %s123
          %s126 = ssub.s32 64, 64
          %127 = vsyncadd %s121, %s126
          %s128 = smul.addr %s12, 64
          %s129 = scalar_lea.hbm %s0, %s128
          %s131 = sshll.u32 %s124, 4
          %s132 = int_to_ptr.vmem [resolvable:$true] %s131
          %134 = dma.hbm_to_vmem [thread:$0]  %s129, 64, %s132, %s121
        $region24: #{tpu_custom_call.1} parent=19 // pred_fallthru
          _
      $region20: #{tpu_custom_call.1} parent=5 // pred_fallthru
        _
      %p135 = scmp.le.s32.totalorder 1, %s12
      %p136 = scmp.lt.s32.totalorder %s12, 3
      %p137 = pnand %p135, %p136
      %p138 = pneg %p137
      // Predicated region
      $region25: #{tpu_custom_call.1} parent=5 // pred_check
        _
      $region26: #{tpu_custom_call.1} parent=5 // pred_check_branch
        %140 = sbr.rel (%p137) target = $region28
      $region27: #{tpu_custom_call.1} parent=5 // pred_region
        %s141 = ssub.s32 %s12, 1
        %s142 = sand.u32 %s25, 1
        %s143 = scalar_lea.sflag [#allocation3], %s142
        %s144 = sand.u32 %s25, 1
        %s145 = smul.addr %s144, 4
        %s146 = scalar_lea.vmem [#allocation2], %s145
        // Predicated region
        $region29: #{tpu_custom_call.1} parent=27 // pred_check
          %p147 = pneg %p38
        $region30: #{tpu_custom_call.1} parent=27 // pred_check_branch
          %149 = sbr.rel (%p147) target = $region32
        $region31: #{tpu_custom_call.1} parent=27 // pred_region
          %150 = dma.done %s143, 64
        $region32: #{tpu_custom_call.1} parent=27 // pred_fallthru
          _
        // Predicated region
        $region33: #{tpu_custom_call.1} parent=27 // pred_check
          %p151 = pneg %p59
        $region34: #{tpu_custom_call.1} parent=27 // pred_check_branch
          %153 = sbr.rel (%p151) target = $region36
        $region35: #{tpu_custom_call.1} parent=27 // pred_region
          %154 = dma.done [#allocation5], 512
        $region36: #{tpu_custom_call.1} parent=27 // pred_fallthru
          _
        %s155 = sand.u32 %s25, 1
        %s156 = scalar_lea.sflag [#allocation3], %s155
        %s157 = sand.u32 %s25, 1
        %s158 = smul.addr %s157, 4
        %s159 = scalar_lea.vmem [#allocation2], %s158
        %p160 = pneg %p38
        %p161 = pneg %p35
        %p162 = pneg %p59
        %p163 = pneg %p56
        %p164 = pneg %p85
        %p165 = pneg %p82
        %s166 = sand.u32 %s72, 1
        %s167 = sand.u32 %s72, 1
        %s168 = smul.addr %s167, 128
        %s169 = scalar_lea.vmem [#allocation6], %s168
        %s170 = smul.u32 16, %s17
        %s171 = ssub.s32 25, %s170
        %p172 = scmp.lt.s32.totalorder %s171, 16
        %s173 = scalar_select %p172, %s171, 16
        %s174 = smul.u32 128, %s173
        %v175 = vld [vmem:[%s146] sm:$0x7]
        %v176 = vmul.f32 %v175, 2.0
        %v177 = vmul.f32 %v175, 4.0
        %v178 = vmul.f32 %v175, 8.0
        %v180 = vrot.slane %v176, 5
        %v183 = vrot.slane %v177, 2
        %v186 = vrot.slane %v178, 7
        %vm188 = vcmask 1042432
        %v189 = vsel %vm188, %v175, %v180
        %vm190 = vcmask 1045504
        %v191 = vsel %vm190, %v189, %v183
        %vm192 = vcmask 1040384
        %v193 = vsel %vm192, %v183, %v186
        %v194 = vadd.f32 %v191, 1.5707964
        %v195 = vadd.f32 %v193, 1.5707964
        %vm198 = vcmask 1043456
        %v199 = vrot.slane %v194, 4
        %v200 = vrot.slane %v195, 4
        %v201 = vsel %vm198, %v199, %v200
        %v204 = vsel %vm198, %v193, %v199
        %v205 = vand.u32 2147483647, %v191
        %vm206 = vcmp.le.f32.partialorder %v205, 0.7853982
        %vm207 = vcmp.lt.s32.totalorder %v191, 0
        %v208 = vand.u32 %v191, 2139095040
        %v209 = vshrl.u32 %v208, 23
        %v210 = vsub.s32 %v209, 127
        %v211 = vand.u32 2147483647, %v191
        %v212 = vand.u32 %v211, 8388607
        %v213 = vor.u32 %v212, 8388608
        %v214 = vsub.s32 0, %v213
        %v215 = vadd.s32 %v210, 1
        %vm216 = vcmp.gt.s32.totalorder %v215, 0
        %v217 = vsel %vm216, %v215, 0
        %v218 = vshrl.u32 %v217, 5
        %v219 = vand.u32 %v217, 31
        %v220 = vsub.s32 32, %v219
        %v221 = vshrl.u32 683565275, %v220
        %v222 = vshll.u32 683565275, %v219
        %v223 = vshrl.u32 2475754826, %v220
        %v224 = vor.u32 %v222, %v223
        %v225 = vshll.u32 2475754826, %v219
        %v226 = vshrl.u32 2131351028, %v220
        %v227 = vor.u32 %v225, %v226
        %v228 = vshll.u32 2131351028, %v219
        %v229 = vshrl.u32 2102212464, %v220
        %v230 = vor.u32 %v228, %v229
        %v231 = vshll.u32 2102212464, %v219
        %v232 = vshrl.u32 920167782, %v220
        %v233 = vor.u32 %v231, %v232
        %v234 = vshll.u32 920167782, %v219
        %v235 = vshrl.u32 1326507024, %v220
        %v236 = vor.u32 %v234, %v235
        %vm237 = vcmp.lt.s32.totalorder %v218, 1
        %vm238 = vcmp.lt.s32.totalorder %v218, 2
        %vm239 = vcmp.lt.s32.totalorder %v218, 3
        %vm240 = vcmp.lt.s32.totalorder %v218, 4
        %v241 = vsel %vm237, %v221, %v224
        %v242 = vsel %vm240, %v230, 2102212464
        %v243 = vsel %vm239, %v227, %v242
        %v244 = vsel %vm238, %v241, %v243
        %v245 = vsel %vm237, %v224, %v227
        %v246 = vsel %vm240, %v233, 920167782
        %v247 = vsel %vm239, %v230, %v246
        %v248 = vsel %vm238, %v245, %v247
        %v249 = vsel %vm237, %v227, %v230
        %v250 = vsel %vm240, %v236, 1326507024
        %v251 = vsel %vm239, %v233, %v250
        %v252 = vsel %vm238, %v249, %v251
        %v253 = vshll.u32 %v213, 8
        %v254 = vmul.u32.u64.compose %v253, %v252
        %v255 = vextract.low.u32 %v254
        %v256 = vextract.high.u32 %v254
        %v257 = vmul.u32.u64.compose %v253, %v248
        %v258 = vextract.low.u32 %v257
        %v259 = vextract.high.u32 %v257
        %v260 = vmul.u32 %v253, %v244
        %v261 = vadd.s32 %v256, %v258
        %vm262 = vc.u32 %v256, %v258
        %v263 = vadd.s32 %v259, 1
        %v264 = vsel %vm262, %v263, %v259
        %v265 = vadd.s32 %v260, %v264
        %v266 = vadd.s32 %v265, 536870912
        %v267 = vshrl.u32 %v266, 30
        %v268 = vshll.u32 %v267, 30
        %v269 = vsub.s32 %v265, %v268
        %vm270 = vcmp.lt.s32.totalorder %v269, 0
        %v271 = vsub.s32 0, %v269
        %v272 = vsel %vm270, %v271, %v269
        %v273 = vclz %v272
        %v274 = vsub.s32 %v273, 2
        %vm275 = vcmp.gt.s32.totalorder 0, %v274
        %v276 = vsel %vm275, 0, %v274
        %v277 = vsub.s32 32, %v276
        %v278 = vshll.u32 %v269, %v276
        %v279 = vshrl.u32 %v261, %v277
        %v280 = vor.u32 %v278, %v279
        %v281 = vsub.s32 4294967266, %v276
        %v282 = vadd.s32 %v281, 127
        %v283 = vshll.u32 %v282, 23
        %v284 = vor.u32 4788187, %v283
        %v285 = vand.u32 2147483647, %v284
        %v287 = vcvt.s32.f32 %v280
        %v288 = vmul.f32 %v287, %v285
        %v289 = vxor.u32 %v288, 2147483648
        %v290 = vsel %vm207, %v289, %v288
        %v291 = vsub.s32 4, %v267
        %v292 = vsel %vm207, %v291, %v267
        %v293 = vsel %vm206, %v191, %v290
        %v294 = vsel %vm206, 0, %v292
        %v295 = vcosq.f32.pop %v293
        %v296 = vsinq.f32.pop %v293
        %vm297 = vweird.f32 %v191
        %v298 = vadd.s32 %v294, 3
        %v299 = vand.u32 %v298, 3
        %vm300 = vcmp.lt.s32.totalorder %v299, 2
        %vm301 = vcmp.eq.s32.totalorder %v299, 0
        %v302 = vxor.u32 %v296, 2147483648
        %v303 = vsel %vm301, %v295, %v302
        %vm304 = vcmp.eq.s32.totalorder %v299, 2
        %v305 = vxor.u32 %v295, 2147483648
        %v306 = vsel %vm304, %v305, %v296
        %v307 = vsel %vm300, %v303, %v306
        %v308 = vsel %vm297, nan, %v307
        %v309 = vand.u32 2147483647, %v204
        %vm310 = vcmp.le.f32.partialorder %v309, 0.7853982
        %vm311 = vcmp.lt.s32.totalorder %v204, 0
        %v312 = vand.u32 %v204, 2139095040
        %v313 = vshrl.u32 %v312, 23
        %v314 = vsub.s32 %v313, 127
        %v315 = vand.u32 2147483647, %v204
        %v316 = vand.u32 %v315, 8388607
        %v317 = vor.u32 %v316, 8388608
        %v318 = vsub.s32 0, %v317
        %v319 = vadd.s32 %v314, 1
        %vm320 = vcmp.gt.s32.totalorder %v319, 0
        %v321 = vsel %vm320, %v319, 0
        %v322 = vshrl.u32 %v321, 5
        %v323 = vand.u32 %v321, 31
        %v324 = vsub.s32 32, %v323
        %v325 = vshrl.u32 683565275, %v324
        %v326 = vshll.u32 683565275, %v323
        %v327 = vshrl.u32 2475754826, %v324
        %v328 = vor.u32 %v326, %v327
        %v329 = vshll.u32 2475754826, %v323
        %v330 = vshrl.u32 2131351028, %v324
        %v331 = vor.u32 %v329, %v330
        %v332 = vshll.u32 2131351028, %v323
        %v333 = vshrl.u32 2102212464, %v324
        %v334 = vor.u32 %v332, %v333
        %v335 = vshll.u32 2102212464, %v323
        %v336 = vshrl.u32 920167782, %v324
        %v337 = vor.u32 %v335, %v336
        %v338 = vshll.u32 920167782, %v323
        %v339 = vshrl.u32 1326507024, %v324
        %v340 = vor.u32 %v338, %v339
        %vm341 = vcmp.lt.s32.totalorder %v322, 1
        %vm342 = vcmp.lt.s32.totalorder %v322, 2
        %vm343 = vcmp.lt.s32.totalorder %v322, 3
        %vm344 = vcmp.lt.s32.totalorder %v322, 4
        %v345 = vsel %vm341, %v325, %v328
        %v346 = vsel %vm344, %v334, 2102212464
        %v347 = vsel %vm343, %v331, %v346
        %v348 = vsel %vm342, %v345, %v347
        %v349 = vsel %vm341, %v328, %v331
        %v350 = vsel %vm344, %v337, 920167782
        %v351 = vsel %vm343, %v334, %v350
        %v352 = vsel %vm342, %v349, %v351
        %v353 = vsel %vm341, %v331, %v334
        %v354 = vsel %vm344, %v340, 1326507024
        %v355 = vsel %vm343, %v337, %v354
        %v356 = vsel %vm342, %v353, %v355
        %v357 = vshll.u32 %v317, 8
        %v358 = vmul.u32.u64.compose %v357, %v356
        %v359 = vextract.low.u32 %v358
        %v360 = vextract.high.u32 %v358
        %v361 = vmul.u32.u64.compose %v357, %v352
        %v362 = vextract.low.u32 %v361
        %v363 = vextract.high.u32 %v361
        %v364 = vmul.u32 %v357, %v348
        %v365 = vadd.s32 %v360, %v362
        %vm366 = vc.u32 %v360, %v362
        %v367 = vadd.s32 %v363, 1
        %v368 = vsel %vm366, %v367, %v363
        %v369 = vadd.s32 %v364, %v368
        %v370 = vadd.s32 %v369, 536870912
        %v371 = vshrl.u32 %v370, 30
        %v372 = vshll.u32 %v371, 30
        %v373 = vsub.s32 %v369, %v372
        %vm374 = vcmp.lt.s32.totalorder %v373, 0
        %v375 = vsub.s32 0, %v373
        %v376 = vsel %vm374, %v375, %v373
        %v377 = vclz %v376
        %v378 = vsub.s32 %v377, 2
        %vm379 = vcmp.gt.s32.totalorder 0, %v378
        %v380 = vsel %vm379, 0, %v378
        %v381 = vsub.s32 32, %v380
        %v382 = vshll.u32 %v373, %v380
        %v383 = vshrl.u32 %v365, %v381
        %v384 = vor.u32 %v382, %v383
        %v385 = vsub.s32 4294967266, %v380
        %v386 = vadd.s32 %v385, 127
        %v387 = vshll.u32 %v386, 23
        %v388 = vor.u32 4788187, %v387
        %v389 = vand.u32 2147483647, %v388
        %v391 = vcvt.s32.f32 %v384
        %v392 = vmul.f32 %v391, %v389
        %v393 = vxor.u32 %v392, 2147483648
        %v394 = vsel %vm311, %v393, %v392
        %v395 = vsub.s32 4, %v371
        %v396 = vsel %vm311, %v395, %v371
        %v397 = vsel %vm310, %v204, %v394
        %v398 = vsel %vm310, 0, %v396
        %v399 = vcosq.f32.pop %v397
        %v400 = vsinq.f32.pop %v397
        %vm401 = vweird.f32 %v204
        %v402 = vadd.s32 %v398, 3
        %v403 = vand.u32 %v402, 3
        %vm404 = vcmp.lt.s32.totalorder %v403, 2
        %vm405 = vcmp.eq.s32.totalorder %v403, 0
        %v406 = vxor.u32 %v400, 2147483648
        %v407 = vsel %vm405, %v399, %v406
        %vm408 = vcmp.eq.s32.totalorder %v403, 2
        %v409 = vxor.u32 %v399, 2147483648
        %v410 = vsel %vm408, %v409, %v400
        %v411 = vsel %vm404, %v407, %v410
        %v412 = vsel %vm401, nan, %v411
        %v413 = vand.u32 2147483647, %v201
        %vm414 = vcmp.le.f32.partialorder %v413, 0.7853982
        %vm415 = vcmp.lt.s32.totalorder %v201, 0
        %v416 = vand.u32 %v201, 2139095040
        %v417 = vshrl.u32 %v416, 23
        %v418 = vsub.s32 %v417, 127
        %v419 = vand.u32 2147483647, %v201
        %v420 = vand.u32 %v419, 8388607
        %v421 = vor.u32 %v420, 8388608
        %v422 = vsub.s32 0, %v421
        %v423 = vadd.s32 %v418, 1
        %vm424 = vcmp.gt.s32.totalorder %v423, 0
        %v425 = vsel %vm424, %v423, 0
        %v426 = vshrl.u32 %v425, 5
        %v427 = vand.u32 %v425, 31
        %v428 = vsub.s32 32, %v427
        %v429 = vshrl.u32 683565275, %v428
        %v430 = vshll.u32 683565275, %v427
        %v431 = vshrl.u32 2475754826, %v428
        %v432 = vor.u32 %v430, %v431
        %v433 = vshll.u32 2475754826, %v427
        %v434 = vshrl.u32 2131351028, %v428
        %v435 = vor.u32 %v433, %v434
        %v436 = vshll.u32 2131351028, %v427
        %v437 = vshrl.u32 2102212464, %v428
        %v438 = vor.u32 %v436, %v437
        %v439 = vshll.u32 2102212464, %v427
        %v440 = vshrl.u32 920167782, %v428
        %v441 = vor.u32 %v439, %v440
        %v442 = vshll.u32 920167782, %v427
        %v443 = vshrl.u32 1326507024, %v428
        %v444 = vor.u32 %v442, %v443
        %vm445 = vcmp.lt.s32.totalorder %v426, 1
        %vm446 = vcmp.lt.s32.totalorder %v426, 2
        %vm447 = vcmp.lt.s32.totalorder %v426, 3
        %vm448 = vcmp.lt.s32.totalorder %v426, 4
        %v449 = vsel %vm445, %v429, %v432
        %v450 = vsel %vm448, %v438, 2102212464
        %v451 = vsel %vm447, %v435, %v450
        %v452 = vsel %vm446, %v449, %v451
        %v453 = vsel %vm445, %v432, %v435
        %v454 = vsel %vm448, %v441, 920167782
        %v455 = vsel %vm447, %v438, %v454
        %v456 = vsel %vm446, %v453, %v455
        %v457 = vsel %vm445, %v435, %v438
        %v458 = vsel %vm448, %v444, 1326507024
        %v459 = vsel %vm447, %v441, %v458
        %v460 = vsel %vm446, %v457, %v459
        %v461 = vshll.u32 %v421, 8
        %v462 = vmul.u32.u64.compose %v461, %v460
        %v463 = vextract.low.u32 %v462
        %v464 = vextract.high.u32 %v462
        %v465 = vmul.u32.u64.compose %v461, %v456
        %v466 = vextract.low.u32 %v465
        %v467 = vextract.high.u32 %v465
        %v468 = vmul.u32 %v461, %v452
        %v469 = vadd.s32 %v464, %v466
        %vm470 = vc.u32 %v464, %v466
        %v471 = vadd.s32 %v467, 1
        %v472 = vsel %vm470, %v471, %v467
        %v473 = vadd.s32 %v468, %v472
        %v474 = vadd.s32 %v473, 536870912
        %v475 = vshrl.u32 %v474, 30
        %v476 = vshll.u32 %v475, 30
        %v477 = vsub.s32 %v473, %v476
        %vm478 = vcmp.lt.s32.totalorder %v477, 0
        %v479 = vsub.s32 0, %v477
        %v480 = vsel %vm478, %v479, %v477
        %v481 = vclz %v480
        %v482 = vsub.s32 %v481, 2
        %vm483 = vcmp.gt.s32.totalorder 0, %v482
        %v484 = vsel %vm483, 0, %v482
        %v485 = vsub.s32 32, %v484
        %v486 = vshll.u32 %v477, %v484
        %v487 = vshrl.u32 %v469, %v485
        %v488 = vor.u32 %v486, %v487
        %v489 = vsub.s32 4294967266, %v484
        %v490 = vadd.s32 %v489, 127
        %v491 = vshll.u32 %v490, 23
        %v492 = vor.u32 4788187, %v491
        %v493 = vand.u32 2147483647, %v492
        %v495 = vcvt.s32.f32 %v488
        %v496 = vmul.f32 %v495, %v493
        %v497 = vxor.u32 %v496, 2147483648
        %v498 = vsel %vm415, %v497, %v496
        %v499 = vsub.s32 4, %v475
        %v500 = vsel %vm415, %v499, %v475
        %v501 = vsel %vm414, %v201, %v498
        %v502 = vsel %vm414, 0, %v500
        %v503 = vcosq.f32.pop %v501
        %v504 = vsinq.f32.pop %v501
        %vm505 = vweird.f32 %v201
        %v506 = vadd.s32 %v502, 3
        %v507 = vand.u32 %v506, 3
        %vm508 = vcmp.lt.s32.totalorder %v507, 2
        %vm509 = vcmp.eq.s32.totalorder %v507, 0
        %v510 = vxor.u32 %v504, 2147483648
        %v511 = vsel %vm509, %v503, %v510
        %vm512 = vcmp.eq.s32.totalorder %v507, 2
        %v513 = vxor.u32 %v503, 2147483648
        %v514 = vsel %vm512, %v513, %v504
        %v515 = vsel %vm508, %v511, %v514
        %v516 = vsel %vm505, nan, %v515
        %v520 = vrot.slane %v308, 5
        %v521 = vrot.slane %v412, 5
        %v522 = vsel %vm188, %v520, %v521
        %v523 = vrot.slane %v516, 5
        %v524 = vsel %vm188, %v521, %v523
        %v529 = vsel %vm188, %v175, %v520
        %v530 = vld [vmem:[#allocation4] sm:$0xff]
        %v531 = vld [vmem:[#allocation4 + $0x8] sm:$0xff]
        %v532 = vld [vmem:[#allocation4 + $0x10] sm:$0xff]
        %v533 = vld [vmem:[#allocation4 + $0x18] sm:$0x7]
        %534 = vxpose.xlu0.b32.start [1/16] %v529, 128
        %535 = vxpose.xlu0.b32.cont [2/16] %v522, 128
        %536 = vxpose.xlu0.b32.cont [3/16] %v524, 128
        %537 = vxpose.xlu0.b32.cont [4/16] %v523, 128
        %538 = vxpose.xlu0.b32.cont [5/16] 0.0, 128
        %539 = vxpose.xlu0.b32.cont [6/16] 0.0, 128
        %540 = vxpose.xlu0.b32.cont [7/16] 0.0, 128
        %541 = vxpose.xlu0.b32.cont [8/16] 0.0, 128
        %542 = vxpose.xlu0.b32.cont [9/16] 0.0, 128
        %543 = vxpose.xlu0.b32.cont [10/16] 0.0, 128
        %544 = vxpose.xlu0.b32.cont [11/16] 0.0, 128
        %545 = vxpose.xlu0.b32.cont [12/16] 0.0, 128
        %546 = vxpose.xlu0.b32.cont [13/16] 0.0, 128
        %547 = vxpose.xlu0.b32.cont [14/16] 0.0, 128
        %548 = vxpose.xlu0.b32.cont [15/16] 0.0, 128
        %549 = vxpose.xlu0.b32.end [16/16] 0.0, 128
        %v550 = vpop.trf.xlu0
        %v551 = vpop.trf.xlu0
        %v552 = vpop.trf.xlu0
        %v553 = vpop.trf.xlu0
        %v554 = vpop.trf.xlu0
        %v555 = vpop.trf.xlu0
        %v556 = vpop.trf.xlu0
        %v557 = vpop.trf.xlu0
        %v558 = vpop.trf.xlu0
        %v559 = vpop.trf.xlu0
        %v560 = vpop.trf.xlu0
        %v561 = vpop.trf.xlu0
        %v562 = vpop.trf.xlu0
        %v563 = vpop.trf.xlu0
        %v564 = vpop.trf.xlu0
        %v565 = vpop.trf.xlu0
        %vm566 = vcmask 220160
        %v568 = vsel %vm566, %v550, 0
        %v571 = vsel %vm566, %v551, 0
        %v574 = vsel %vm566, %v552, 0
        %v577 = vsel %vm566, %v553, 0
        %v580 = vsel %vm566, %v554, 0
        %v583 = vsel %vm566, %v555, 0
        %v586 = vsel %vm566, %v556, 0
        %v589 = vsel %vm566, %v557, 0
        %v592 = vsel %vm566, %v558, 0
        %v595 = vsel %vm566, %v559, 0
        %v598 = vsel %vm566, %v560, 0
        %v601 = vsel %vm566, %v561, 0
        %v604 = vsel %vm566, %v562, 0
        %v607 = vsel %vm566, %v563, 0
        %v610 = vsel %vm566, %v564, 0
        %v613 = vsel %vm566, %v565, 0
        %v616 = vsel %vm188, %v533, 0
        %618 = vmatprep.subr.mxu0 0.0
        %v619 = vand.u32 %v530, 4294901760
        %620 = vmatpush1.msra.mxu0 %v619
        %621 = vmatprep.subr.mxu0 0.0
        %v622 = vand.u32 %v531, 4294901760
        %623 = vmatpush1.msra.mxu0 %v622
        %624 = vmatprep.subr.mxu0 0.0
        %v625 = vand.u32 %v532, 4294901760
        %626 = vmatpush1.msra.mxu0 %v625
        %627 = vmatprep.subr.mxu0 0.0
        %v628 = vand.u32 %v616, 4294901760
        %629 = vmatpush1.msra.mxu0 %v628
        %630 = vmatprep.subr.mxu0 0.0
        %631 = vmatpush1.msra.mxu0 0.0
        %632 = vmatprep.subr.mxu0 0.0
        %633 = vmatpush1.msra.mxu0 0.0
        %634 = vmatprep.subr.mxu0 0.0
        %635 = vmatpush1.msra.mxu0 0.0
        %636 = vmatprep.subr.mxu0 0.0
        %637 = vmatpush1.msra.mxu0 0.0
        %638 = vmatprep.subr.mxu0 0.0
        %639 = vmatpush1.msra.mxu0 0.0
        %640 = vmatprep.subr.mxu0 0.0
        %641 = vmatpush1.msra.mxu0 0.0
        %642 = vmatprep.subr.mxu0 0.0
        %643 = vmatpush1.msra.mxu0 0.0
        %644 = vmatprep.subr.mxu0 0.0
        %645 = vmatpush1.msra.mxu0 0.0
        %646 = vmatprep.subr.mxu0 0.0
        %647 = vmatpush1.msra.mxu0 0.0
        %648 = vmatprep.subr.mxu0 0.0
        %649 = vmatpush1.msra.mxu0 0.0
        %650 = vmatprep.subr.mxu0 0.0
        %651 = vmatpush1.msra.mxu0 0.0
        %652 = vmatprep.subr.mxu0 0.0
        %653 = vmatpush1.msra.mxu0 0.0
        %654 = vmatprep.subr.mxu0 0.0
        %655 = vmatpush1.msra.mxu0 0.0
        %656 = vmatprep.subr.mxu0 0.0
        %657 = vmatpush1.msra.mxu0 0.0
        %658 = vmatprep.subr.mxu0 0.0
        %659 = vmatpush1.msra.mxu0 0.0
        %660 = vmatprep.subr.mxu0 0.0
        %661 = vmatpush1.msra.mxu0 0.0
        %662 = vmatprep.subr.mxu0 0.0
        %663 = vmatpush1.msra.mxu0 0.0
        %664 = vmatprep.subr.mxu0 0.0
        %665 = vmatpush1.msra.mxu0 0.0
        %666 = vmatprep.subr.mxu0 0.0
        %667 = vmatpush1.msra.mxu0 0.0
        %668 = vmatprep.subr.mxu0 0.0
        %669 = vmatpush1.msra.mxu0 0.0
        %670 = vmatprep.subr.mxu0 0.0
        %671 = vmatpush1.msra.mxu0 0.0
        %672 = vmatprep.subr.mxu0 0.0
        %673 = vmatpush1.msra.mxu0 0.0
        %674 = vmatprep.subr.mxu0 0.0
        %675 = vmatpush1.msra.mxu0 0.0
        %676 = vmatprep.subr.mxu0 0.0
        %677 = vmatpush1.msra.mxu0 0.0
        %678 = vmatprep.subr.mxu0 0.0
        %679 = vmatpush1.msra.mxu0 0.0
        %680 = vmatprep.subr.mxu0 0.0
        %681 = vmatpush1.msra.mxu0 0.0
        %682 = vmatprep.subr.mxu0 0.0
        %683 = vmatpush1.msra.mxu0 0.0
        %684 = vmatprep.subr.mxu0 0.0
        %685 = vmatpush1.msra.mxu0 0.0
        %686 = vmatprep.mubr.f32.mxu0 0.0
        %v687 = vand.u32 %v568, 4294901760
        %v688 = vsub.f32 %v568, %v687
        %v689 = vand.u32 %v688, 4294901760
        %v690 = vsub.f32 %v688, %v689
        %v691 = vand.u32 %v690, 4294901760
        %692 = vmatmul.mubr.f32.gmra.mrb[0].mxu0 %v691
        %v693 = vpop.f32.mrb[0].mxu0
        %v694 = vadd.f32 0.0, %v693
        %v695 = vpop.f32.mrb[0].mxu0
        %696 = vmatprep.mubr.f32.mxu0 0.0
        %v697 = vand.u32 %v571, 4294901760
        %v698 = vsub.f32 %v571, %v697
        %v699 = vand.u32 %v698, 4294901760
        %v700 = vsub.f32 %v698, %v699
        %v701 = vand.u32 %v700, 4294901760
        %702 = vmatmul.mubr.f32.gmra.mrb[0].mxu0 %v701
        %v703 = vpop.f32.mrb[0].mxu0
        %v704 = vadd.f32 0.0, %v703
        %v705 = vpop.f32.mrb[0].mxu0
        %706 = vmatprep.mubr.f32.mxu0 0.0
        %v707 = vand.u32 %v574, 4294901760
        %v708 = vsub.f32 %v574, %v707
        %v709 = vand.u32 %v708, 4294901760
        %v710 = vsub.f32 %v708, %v709
        %v711 = vand.u32 %v710, 4294901760
        %712 = vmatmul.mubr.f32.gmra.mrb[0].mxu0 %v711
        %v713 = vpop.f32.mrb[0].mxu0
        %v714 = vadd.f32 0.0, %v713
        %v715 = vpop.f32.mrb[0].mxu0
        %716 = vmatprep.mubr.f32.mxu0 0.0
        %v717 = vand.u32 %v577, 4294901760
        %v718 = vsub.f32 %v577, %v717
        %v719 = vand.u32 %v718, 4294901760
        %v720 = vsub.f32 %v718, %v719
        %v721 = vand.u32 %v720, 4294901760
        %722 = vmatmul.mubr.f32.gmra.mrb[0].mxu0 %v721
        %v723 = vpop.f32.mrb[0].mxu0
        %v724 = vadd.f32 0.0, %v723
        %v725 = vpop.f32.mrb[0].mxu0
        %726 = vmatprep.mubr.f32.mxu0 0.0
        %v727 = vand.u32 %v580, 4294901760
        %v728 = vsub.f32 %v580, %v727
        %v729 = vand.u32 %v728, 4294901760
        %v730 = vsub.f32 %v728, %v729
        %v731 = vand.u32 %v730, 4294901760
        %732 = vmatmul.mubr.f32.gmra.mrb[0].mxu0 %v731
        %v733 = vpop.f32.mrb[0].mxu0
        %v734 = vadd.f32 0.0, %v733
        %v735 = vpop.f32.mrb[0].mxu0
        %736 = vmatprep.mubr.f32.mxu0 0.0
        %v737 = vand.u32 %v583, 4294901760
        %v738 = vsub.f32 %v583, %v737
        %v739 = vand.u32 %v738, 4294901760
        %v740 = vsub.f32 %v738, %v739
        %v741 = vand.u32 %v740, 4294901760
        %742 = vmatmul.mubr.f32.gmra.mrb[0].mxu0 %v741
        %v743 = vpop.f32.mrb[0].mxu0
        %v744 = vadd.f32 0.0, %v743
        %v745 = vpop.f32.mrb[0].mxu0
        %746 = vmatprep.mubr.f32.mxu0 0.0
        %v747 = vand.u32 %v586, 4294901760
        %v748 = vsub.f32 %v586, %v747
        %v749 = vand.u32 %v748, 4294901760
        %v750 = vsub.f32 %v748, %v749
        %v751 = vand.u32 %v750, 4294901760
        %752 = vmatmul.mubr.f32.gmra.mrb[0].mxu0 %v751
        %v753 = vpop.f32.mrb[0].mxu0
        %v754 = vadd.f32 0.0, %v753
        %v755 = vpop.f32.mrb[0].mxu0
        %756 = vmatprep.mubr.f32.mxu0 0.0
        %v757 = vand.u32 %v589, 4294901760
        %v758 = vsub.f32 %v589, %v757
        %v759 = vand.u32 %v758, 4294901760
        %v760 = vsub.f32 %v758, %v759
        %v761 = vand.u32 %v760, 4294901760
        %762 = vmatmul.mubr.f32.gmra.mrb[0].mxu0 %v761
        %v763 = vpop.f32.mrb[0].mxu0
        %v764 = vadd.f32 0.0, %v763
        %v765 = vpop.f32.mrb[0].mxu0
        %766 = vmatprep.mubr.f32.mxu0 0.0
        %v767 = vand.u32 %v592, 4294901760
        %v768 = vsub.f32 %v592, %v767
        %v769 = vand.u32 %v768, 4294901760
        %v770 = vsub.f32 %v768, %v769
        %v771 = vand.u32 %v770, 4294901760
        %772 = vmatmul.mubr.f32.gmra.mrb[0].mxu0 %v771
        %v773 = vpop.f32.mrb[0].mxu0
        %v774 = vadd.f32 0.0, %v773
        %v775 = vpop.f32.mrb[0].mxu0
        %776 = vmatprep.mubr.f32.mxu0 0.0
        %v777 = vand.u32 %v595, 4294901760
        %v778 = vsub.f32 %v595, %v777
        %v779 = vand.u32 %v778, 4294901760
        %v780 = vsub.f32 %v778, %v779
        %v781 = vand.u32 %v780, 4294901760
        %782 = vmatmul.mubr.f32.gmra.mrb[0].mxu0 %v781
        %v783 = vpop.f32.mrb[0].mxu0
        %v784 = vadd.f32 0.0, %v783
        %v785 = vpop.f32.mrb[0].mxu0
        %786 = vmatprep.mubr.f32.mxu0 0.0
        %v787 = vand.u32 %v598, 4294901760
        %v788 = vsub.f32 %v598, %v787
        %v789 = vand.u32 %v788, 4294901760
        %v790 = vsub.f32 %v788, %v789
        %v791 = vand.u32 %v790, 4294901760
        %792 = vmatmul.mubr.f32.gmra.mrb[0].mxu0 %v791
        %v793 = vpop.f32.mrb[0].mxu0
        %v794 = vadd.f32 0.0, %v793
        %v795 = vpop.f32.mrb[0].mxu0
        %796 = vmatprep.mubr.f32.mxu0 0.0
        %v797 = vand.u32 %v601, 4294901760
        %v798 = vsub.f32 %v601, %v797
        %v799 = vand.u32 %v798, 4294901760
        %v800 = vsub.f32 %v798, %v799
        %v801 = vand.u32 %v800, 4294901760
        %802 = vmatmul.mubr.f32.gmra.mrb[0].mxu0 %v801
        %v803 = vpop.f32.mrb[0].mxu0
        %v804 = vadd.f32 0.0, %v803
        %v805 = vpop.f32.mrb[0].mxu0
        %806 = vmatprep.mubr.f32.mxu0 0.0
        %v807 = vand.u32 %v604, 4294901760
        %v808 = vsub.f32 %v604, %v807
        %v809 = vand.u32 %v808, 4294901760
        %v810 = vsub.f32 %v808, %v809
        %v811 = vand.u32 %v810, 4294901760
        %812 = vmatmul.mubr.f32.gmra.mrb[0].mxu0 %v811
        %v813 = vpop.f32.mrb[0].mxu0
        %v814 = vadd.f32 0.0, %v813
        %v815 = vpop.f32.mrb[0].mxu0
        %816 = vmatprep.mubr.f32.mxu0 0.0
        %v817 = vand.u32 %v607, 4294901760
        %v818 = vsub.f32 %v607, %v817
        %v819 = vand.u32 %v818, 4294901760
        %v820 = vsub.f32 %v818, %v819
        %v821 = vand.u32 %v820, 4294901760
        %822 = vmatmul.mubr.f32.gmra.mrb[0].mxu0 %v821
        %v823 = vpop.f32.mrb[0].mxu0
        %v824 = vadd.f32 0.0, %v823
        %v825 = vpop.f32.mrb[0].mxu0
        %826 = vmatprep.mubr.f32.mxu0 0.0
        %v827 = vand.u32 %v610, 4294901760
        %v828 = vsub.f32 %v610, %v827
        %v829 = vand.u32 %v828, 4294901760
        %v830 = vsub.f32 %v828, %v829
        %v831 = vand.u32 %v830, 4294901760
        %832 = vmatmul.mubr.f32.gmra.mrb[0].mxu0 %v831
        %v833 = vpop.f32.mrb[0].mxu0
        %v834 = vadd.f32 0.0, %v833
        %v835 = vpop.f32.mrb[0].mxu0
        %836 = vmatprep.mubr.f32.mxu0 0.0
        %v837 = vand.u32 %v613, 4294901760
        %v838 = vsub.f32 %v613, %v837
        %v839 = vand.u32 %v838, 4294901760
        %v840 = vsub.f32 %v838, %v839
        %v841 = vand.u32 %v840, 4294901760
        %842 = vmatmul.mubr.f32.gmra.mrb[0].mxu0 %v841
        %v843 = vpop.f32.mrb[0].mxu0
        %v844 = vadd.f32 0.0, %v843
        %v845 = vpop.f32.mrb[0].mxu0
        %846 = vdwg.mxu0
        %847 = vmatprep.subr.mxu0 0.0
        %v848 = vand.u32 %v530, 4294901760
        %v849 = vsub.f32 %v530, %v848
        %v850 = vand.u32 %v849, 4294901760
        %v851 = vsub.f32 %v849, %v850
        %v852 = vand.u32 %v851, 4294901760
        %853 = vmatpush1.msra.mxu0 %v852
        %854 = vmatprep.subr.mxu0 0.0
        %v855 = vand.u32 %v531, 4294901760
        %v856 = vsub.f32 %v531, %v855
        %v857 = vand.u32 %v856, 4294901760
        %v858 = vsub.f32 %v856, %v857
        %v859 = vand.u32 %v858, 4294901760
        %860 = vmatpush1.msra.mxu0 %v859
        %861 = vmatprep.subr.mxu0 0.0
        %v862 = vand.u32 %v532, 4294901760
        %v863 = vsub.f32 %v532, %v862
        %v864 = vand.u32 %v863, 4294901760
        %v865 = vsub.f32 %v863, %v864
        %v866 = vand.u32 %v865, 4294901760
        %867 = vmatpush1.msra.mxu0 %v866
        %868 = vmatprep.subr.mxu0 0.0
        %v869 = vand.u32 %v616, 4294901760
        %v870 = vsub.f32 %v616, %v869
        %v871 = vand.u32 %v870, 4294901760
        %v872 = vsub.f32 %v870, %v871
        %v873 = vand.u32 %v872, 4294901760
        %874 = vmatpush1.msra.mxu0 %v873
        %875 = vmatprep.subr.mxu0 0.0
        %876 = vmatpush1.msra.mxu0 0.0
        %877 = vmatprep.subr.mxu0 0.0
        %878 = vmatpush1.msra.mxu0 0.0
        %879 = vmatprep.subr.mxu0 0.0
        %880 = vmatpush1.msra.mxu0 0.0
        %881 = vmatprep.subr.mxu0 0.0
        %882 = vmatpush1.msra.mxu0 0.0
        %883 = vmatprep.subr.mxu0 0.0
        %884 = vmatpush1.msra.mxu0 0.0
        %885 = vmatprep.subr.mxu0 0.0
        %886 = vmatpush1.msra.mxu0 0.0
        %887 = vmatprep.subr.mxu0 0.0
        %888 = vmatpush1.msra.mxu0 0.0
        %889 = vmatprep.subr.mxu0 0.0
        %890 = vmatpush1.msra.mxu0 0.0
        %891 = vmatprep.subr.mxu0 0.0
        %892 = vmatpush1.msra.mxu0 0.0
        %893 = vmatprep.subr.mxu0 0.0
        %894 = vmatpush1.msra.mxu0 0.0
        %895 = vmatprep.subr.mxu0 0.0
        %896 = vmatpush1.msra.mxu0 0.0
        %897 = vmatprep.subr.mxu0 0.0
        %898 = vmatpush1.msra.mxu0 0.0
        %899 = vmatprep.subr.mxu0 0.0
        %900 = vmatpush1.msra.mxu0 0.0
        %901 = vmatprep.subr.mxu0 0.0
        %902 = vmatpush1.msra.mxu0 0.0
        %903 = vmatprep.subr.mxu0 0.0
        %904 = vmatpush1.msra.mxu0 0.0
        %905 = vmatprep.subr.mxu0 0.0
        %906 = vmatpush1.msra.mxu0 0.0
        %907 = vmatprep.subr.mxu0 0.0
        %908 = vmatpush1.msra.mxu0 0.0
        %909 = vmatprep.subr.mxu0 0.0
        %910 = vmatpush1.msra.mxu0 0.0
        %911 = vmatprep.subr.mxu0 0.0
        %912 = vmatpush1.msra.mxu0 0.0
        %913 = vmatprep.subr.mxu0 0.0
        %914 = vmatpush1.msra.mxu0 0.0
        %915 = vmatprep.subr.mxu0 0.0
        %916 = vmatpush1.msra.mxu0 0.0
        %917 = vmatprep.subr.mxu0 0.0
        %918 = vmatpush1.msra.mxu0 0.0
        %919 = vmatprep.subr.mxu0 0.0
        %920 = vmatpush1.msra.mxu0 0.0
        %921 = vmatprep.subr.mxu0 0.0
        %922 = vmatpush1.msra.mxu0 0.0
        %923 = vmatprep.subr.mxu0 0.0
        %924 = vmatpush1.msra.mxu0 0.0
        %925 = vmatprep.subr.mxu0 0.0
        %926 = vmatpush1.msra.mxu0 0.0
        %927 = vmatprep.subr.mxu0 0.0
        %928 = vmatpush1.msra.mxu0 0.0
        %929 = vmatprep.subr.mxu0 0.0
        %930 = vmatpush1.msra.mxu0 0.0
        %931 = vmatprep.mubr.f32.mxu0 0.0
        %v932 = vand.u32 %v568, 4294901760
        %933 = vmatmul.mubr.f32.gmra.mrb[0].mxu0 %v932
        %v934 = vpop.f32.mrb[0].mxu0
        %v935 = vadd.f32 %v694, %v934
        %v936 = vpop.f32.mrb[0].mxu0
        %937 = vmatprep.mubr.f32.mxu0 0.0
        %v938 = vand.u32 %v571, 4294901760
        %939 = vmatmul.mubr.f32.gmra.mrb[0].mxu0 %v938
        %v940 = vpop.f32.mrb[0].mxu0
        %v941 = vadd.f32 %v704, %v940
        %v942 = vpop.f32.mrb[0].mxu0
        %943 = vmatprep.mubr.f32.mxu0 0.0
        %v944 = vand.u32 %v574, 4294901760
        %945 = vmatmul.mubr.f32.gmra.mrb[0].mxu0 %v944
        %v946 = vpop.f32.mrb[0].mxu0
        %v947 = vadd.f32 %v714, %v946
        %v948 = vpop.f32.mrb[0].mxu0
        %949 = vmatprep.mubr.f32.mxu0 0.0
        %v950 = vand.u32 %v577, 4294901760
        %951 = vmatmul.mubr.f32.gmra.mrb[0].mxu0 %v950
        %v952 = vpop.f32.mrb[0].mxu0
        %v953 = vadd.f32 %v724, %v952
        %v954 = vpop.f32.mrb[0].mxu0
        %955 = vmatprep.mubr.f32.mxu0 0.0
        %v956 = vand.u32 %v580, 4294901760
        %957 = vmatmul.mubr.f32.gmra.mrb[0].mxu0 %v956
        %v958 = vpop.f32.mrb[0].mxu0
        %v959 = vadd.f32 %v734, %v958
        %v960 = vpop.f32.mrb[0].mxu0
        %961 = vmatprep.mubr.f32.mxu0 0.0
        %v962 = vand.u32 %v583, 4294901760
        %963 = vmatmul.mubr.f32.gmra.mrb[0].mxu0 %v962
        %v964 = vpop.f32.mrb[0].mxu0
        %v965 = vadd.f32 %v744, %v964
        %v966 = vpop.f32.mrb[0].mxu0
        %967 = vmatprep.mubr.f32.mxu0 0.0
        %v968 = vand.u32 %v586, 4294901760
        %969 = vmatmul.mubr.f32.gmra.mrb[0].mxu0 %v968
        %v970 = vpop.f32.mrb[0].mxu0
        %v971 = vadd.f32 %v754, %v970
        %v972 = vpop.f32.mrb[0].mxu0
        %973 = vmatprep.mubr.f32.mxu0 0.0
        %v974 = vand.u32 %v589, 4294901760
        %975 = vmatmul.mubr.f32.gmra.mrb[0].mxu0 %v974
        %v976 = vpop.f32.mrb[0].mxu0
        %v977 = vadd.f32 %v764, %v976
        %v978 = vpop.f32.mrb[0].mxu0
        %979 = vmatprep.mubr.f32.mxu0 0.0
        %v980 = vand.u32 %v592, 4294901760
        %981 = vmatmul.mubr.f32.gmra.mrb[0].mxu0 %v980
        %v982 = vpop.f32.mrb[0].mxu0
        %v983 = vadd.f32 %v774, %v982
        %v984 = vpop.f32.mrb[0].mxu0
        %985 = vmatprep.mubr.f32.mxu0 0.0
        %v986 = vand.u32 %v595, 4294901760
        %987 = vmatmul.mubr.f32.gmra.mrb[0].mxu0 %v986
        %v988 = vpop.f32.mrb[0].mxu0
        %v989 = vadd.f32 %v784, %v988
        %v990 = vpop.f32.mrb[0].mxu0
        %991 = vmatprep.mubr.f32.mxu0 0.0
        %v992 = vand.u32 %v598, 4294901760
        %993 = vmatmul.mubr.f32.gmra.mrb[0].mxu0 %v992
        %v994 = vpop.f32.mrb[0].mxu0
        %v995 = vadd.f32 %v794, %v994
        %v996 = vpop.f32.mrb[0].mxu0
        %997 = vmatprep.mubr.f32.mxu0 0.0
        %v998 = vand.u32 %v601, 4294901760
        %999 = vmatmul.mubr.f32.gmra.mrb[0].mxu0 %v998
        %v1000 = vpop.f32.mrb[0].mxu0
        %v1001 = vadd.f32 %v804, %v1000
        %v1002 = vpop.f32.mrb[0].mxu0
        %1003 = vmatprep.mubr.f32.mxu0 0.0
        %v1004 = vand.u32 %v604, 4294901760
        %1005 = vmatmul.mubr.f32.gmra.mrb[0].mxu0 %v1004
        %v1006 = vpop.f32.mrb[0].mxu0
        %v1007 = vadd.f32 %v814, %v1006
        %v1008 = vpop.f32.mrb[0].mxu0
        %1009 = vmatprep.mubr.f32.mxu0 0.0
        %v1010 = vand.u32 %v607, 4294901760
        %1011 = vmatmul.mubr.f32.gmra.mrb[0].mxu0 %v1010
        %v1012 = vpop.f32.mrb[0].mxu0
        %v1013 = vadd.f32 %v824, %v1012
        %v1014 = vpop.f32.mrb[0].mxu0
        %1015 = vmatprep.mubr.f32.mxu0 0.0
        %v1016 = vand.u32 %v610, 4294901760
        %1017 = vmatmul.mubr.f32.gmra.mrb[0].mxu0 %v1016
        %v1018 = vpop.f32.mrb[0].mxu0
        %v1019 = vadd.f32 %v834, %v1018
        %v1020 = vpop.f32.mrb[0].mxu0
        %1021 = vmatprep.mubr.f32.mxu0 0.0
        %v1022 = vand.u32 %v613, 4294901760
        %1023 = vmatmul.mubr.f32.gmra.mrb[0].mxu0 %v1022
        %v1024 = vpop.f32.mrb[0].mxu0
        %v1025 = vadd.f32 %v844, %v1024
        %v1026 = vpop.f32.mrb[0].mxu0
        %1027 = vdwg.mxu0
        %1028 = vmatprep.subr.mxu0 0.0
        %v1029 = vand.u32 %v530, 4294901760
        %v1030 = vsub.f32 %v530, %v1029
        %1031 = vmatpush1.msra.mxu0 %v1030
        %1032 = vmatprep.subr.mxu0 0.0
        %v1033 = vand.u32 %v531, 4294901760
        %v1034 = vsub.f32 %v531, %v1033
        %1035 = vmatpush1.msra.mxu0 %v1034
        %1036 = vmatprep.subr.mxu0 0.0
        %v1037 = vand.u32 %v532, 4294901760
        %v1038 = vsub.f32 %v532, %v1037
        %1039 = vmatpush1.msra.mxu0 %v1038
        %1040 = vmatprep.subr.mxu0 0.0
        %v1041 = vand.u32 %v616, 4294901760
        %v1042 = vsub.f32 %v616, %v1041
        %1043 = vmatpush1.msra.mxu0 %v1042
        %1044 = vmatprep.subr.mxu0 0.0
        %1045 = vmatpush1.msra.mxu0 0.0
        %1046 = vmatprep.subr.mxu0 0.0
        %1047 = vmatpush1.msra.mxu0 0.0
        %1048 = vmatprep.subr.mxu0 0.0
        %1049 = vmatpush1.msra.mxu0 0.0
        %1050 = vmatprep.subr.mxu0 0.0
        %1051 = vmatpush1.msra.mxu0 0.0
        %1052 = vmatprep.subr.mxu0 0.0
        %1053 = vmatpush1.msra.mxu0 0.0
        %1054 = vmatprep.subr.mxu0 0.0
        %1055 = vmatpush1.msra.mxu0 0.0
        %1056 = vmatprep.subr.mxu0 0.0
        %1057 = vmatpush1.msra.mxu0 0.0
        %1058 = vmatprep.subr.mxu0 0.0
        %1059 = vmatpush1.msra.mxu0 0.0
        %1060 = vmatprep.subr.mxu0 0.0
        %1061 = vmatpush1.msra.mxu0 0.0
        %1062 = vmatprep.subr.mxu0 0.0
        %1063 = vmatpush1.msra.mxu0 0.0
        %1064 = vmatprep.subr.mxu0 0.0
        %1065 = vmatpush1.msra.mxu0 0.0
        %1066 = vmatprep.subr.mxu0 0.0
        %1067 = vmatpush1.msra.mxu0 0.0
        %1068 = vmatprep.subr.mxu0 0.0
        %1069 = vmatpush1.msra.mxu0 0.0
        %1070 = vmatprep.subr.mxu0 0.0
        %1071 = vmatpush1.msra.mxu0 0.0
        %1072 = vmatprep.subr.mxu0 0.0
        %1073 = vmatpush1.msra.mxu0 0.0
        %1074 = vmatprep.subr.mxu0 0.0
        %1075 = vmatpush1.msra.mxu0 0.0
        %1076 = vmatprep.subr.mxu0 0.0
        %1077 = vmatpush1.msra.mxu0 0.0
        %1078 = vmatprep.subr.mxu0 0.0
        %1079 = vmatpush1.msra.mxu0 0.0
        %1080 = vmatprep.subr.mxu0 0.0
        %1081 = vmatpush1.msra.mxu0 0.0
        %1082 = vmatprep.subr.mxu0 0.0
        %1083 = vmatpush1.msra.mxu0 0.0
        %1084 = vmatprep.subr.mxu0 0.0
        %1085 = vmatpush1.msra.mxu0 0.0
        %1086 = vmatprep.subr.mxu0 0.0
        %1087 = vmatpush1.msra.mxu0 0.0
        %1088 = vmatprep.subr.mxu0 0.0
        %1089 = vmatpush1.msra.mxu0 0.0
        %1090 = vmatprep.subr.mxu0 0.0
        %1091 = vmatpush1.msra.mxu0 0.0
        %1092 = vmatprep.subr.mxu0 0.0
        %1093 = vmatpush1.msra.mxu0 0.0
        %1094 = vmatprep.subr.mxu0 0.0
        %1095 = vmatpush1.msra.mxu0 0.0
        %1096 = vmatprep.subr.mxu0 0.0
        %1097 = vmatpush1.msra.mxu0 0.0
        %1098 = vmatprep.subr.mxu0 0.0
        %1099 = vmatpush1.msra.mxu0 0.0
        %1100 = vmatprep.mubr.f32.mxu0 0.0
        %v1101 = vand.u32 %v568, 4294901760
        %v1102 = vsub.f32 %v568, %v1101
        %1103 = vmatmul.mubr.f32.gmra.mrb[0].mxu0 %v1102
        %v1104 = vpop.f32.mrb[0].mxu0
        %v1105 = vadd.f32 %v935, %v1104
        %v1106 = vpop.f32.mrb[0].mxu0
        %1107 = vmatprep.mubr.f32.mxu0 0.0
        %v1108 = vand.u32 %v571, 4294901760
        %v1109 = vsub.f32 %v571, %v1108
        %1110 = vmatmul.mubr.f32.gmra.mrb[0].mxu0 %v1109
        %v1111 = vpop.f32.mrb[0].mxu0
        %v1112 = vadd.f32 %v941, %v1111
        %v1113 = vpop.f32.mrb[0].mxu0
        %1114 = vmatprep.mubr.f32.mxu0 0.0
        %v1115 = vand.u32 %v574, 4294901760
        %v1116 = vsub.f32 %v574, %v1115
        %1117 = vmatmul.mubr.f32.gmra.mrb[0].mxu0 %v1116
        %v1118 = vpop.f32.mrb[0].mxu0
        %v1119 = vadd.f32 %v947, %v1118
        %v1120 = vpop.f32.mrb[0].mxu0
        %1121 = vmatprep.mubr.f32.mxu0 0.0
        %v1122 = vand.u32 %v577, 4294901760
        %v1123 = vsub.f32 %v577, %v1122
        %1124 = vmatmul.mubr.f32.gmra.mrb[0].mxu0 %v1123
        %v1125 = vpop.f32.mrb[0].mxu0
        %v1126 = vadd.f32 %v953, %v1125
        %v1127 = vpop.f32.mrb[0].mxu0
        %1128 = vmatprep.mubr.f32.mxu0 0.0
        %v1129 = vand.u32 %v580, 4294901760
        %v1130 = vsub.f32 %v580, %v1129
        %1131 = vmatmul.mubr.f32.gmra.mrb[0].mxu0 %v1130
        %v1132 = vpop.f32.mrb[0].mxu0
        %v1133 = vadd.f32 %v959, %v1132
        %v1134 = vpop.f32.mrb[0].mxu0
        %1135 = vmatprep.mubr.f32.mxu0 0.0
        %v1136 = vand.u32 %v583, 4294901760
        %v1137 = vsub.f32 %v583, %v1136
        %1138 = vmatmul.mubr.f32.gmra.mrb[0].mxu0 %v1137
        %v1139 = vpop.f32.mrb[0].mxu0
        %v1140 = vadd.f32 %v965, %v1139
        %v1141 = vpop.f32.mrb[0].mxu0
        %1142 = vmatprep.mubr.f32.mxu0 0.0
        %v1143 = vand.u32 %v586, 4294901760
        %v1144 = vsub.f32 %v586, %v1143
        %1145 = vmatmul.mubr.f32.gmra.mrb[0].mxu0 %v1144
        %v1146 = vpop.f32.mrb[0].mxu0
        %v1147 = vadd.f32 %v971, %v1146
        %v1148 = vpop.f32.mrb[0].mxu0
        %1149 = vmatprep.mubr.f32.mxu0 0.0
        %v1150 = vand.u32 %v589, 4294901760
        %v1151 = vsub.f32 %v589, %v1150
        %1152 = vmatmul.mubr.f32.gmra.mrb[0].mxu0 %v1151
        %v1153 = vpop.f32.mrb[0].mxu0
        %v1154 = vadd.f32 %v977, %v1153
        %v1155 = vpop.f32.mrb[0].mxu0
        %1156 = vmatprep.mubr.f32.mxu0 0.0
        %v1157 = vand.u32 %v592, 4294901760
        %v1158 = vsub.f32 %v592, %v1157
        %1159 = vmatmul.mubr.f32.gmra.mrb[0].mxu0 %v1158
        %v1160 = vpop.f32.mrb[0].mxu0
        %v1161 = vadd.f32 %v983, %v1160
        %v1162 = vpop.f32.mrb[0].mxu0
        %1163 = vmatprep.mubr.f32.mxu0 0.0
        %v1164 = vand.u32 %v595, 4294901760
        %v1165 = vsub.f32 %v595, %v1164
        %1166 = vmatmul.mubr.f32.gmra.mrb[0].mxu0 %v1165
        %v1167 = vpop.f32.mrb[0].mxu0
        %v1168 = vadd.f32 %v989, %v1167
        %v1169 = vpop.f32.mrb[0].mxu0
        %1170 = vmatprep.mubr.f32.mxu0 0.0
        %v1171 = vand.u32 %v598, 4294901760
        %v1172 = vsub.f32 %v598, %v1171
        %1173 = vmatmul.mubr.f32.gmra.mrb[0].mxu0 %v1172
        %v1174 = vpop.f32.mrb[0].mxu0
        %v1175 = vadd.f32 %v995, %v1174
        %v1176 = vpop.f32.mrb[0].mxu0
        %1177 = vmatprep.mubr.f32.mxu0 0.0
        %v1178 = vand.u32 %v601, 4294901760
        %v1179 = vsub.f32 %v601, %v1178
        %1180 = vmatmul.mubr.f32.gmra.mrb[0].mxu0 %v1179
        %v1181 = vpop.f32.mrb[0].mxu0
        %v1182 = vadd.f32 %v1001, %v1181
        %v1183 = vpop.f32.mrb[0].mxu0
        %1184 = vmatprep.mubr.f32.mxu0 0.0
        %v1185 = vand.u32 %v604, 4294901760
        %v1186 = vsub.f32 %v604, %v1185
        %1187 = vmatmul.mubr.f32.gmra.mrb[0].mxu0 %v1186
        %v1188 = vpop.f32.mrb[0].mxu0
        %v1189 = vadd.f32 %v1007, %v1188
        %v1190 = vpop.f32.mrb[0].mxu0
        %1191 = vmatprep.mubr.f32.mxu0 0.0
        %v1192 = vand.u32 %v607, 4294901760
        %v1193 = vsub.f32 %v607, %v1192
        %1194 = vmatmul.mubr.f32.gmra.mrb[0].mxu0 %v1193
        %v1195 = vpop.f32.mrb[0].mxu0
        %v1196 = vadd.f32 %v1013, %v1195
        %v1197 = vpop.f32.mrb[0].mxu0
        %1198 = vmatprep.mubr.f32.mxu0 0.0
        %v1199 = vand.u32 %v610, 4294901760
        %v1200 = vsub.f32 %v610, %v1199
        %1201 = vmatmul.mubr.f32.gmra.mrb[0].mxu0 %v1200
        %v1202 = vpop.f32.mrb[0].mxu0
        %v1203 = vadd.f32 %v1019, %v1202
        %v1204 = vpop.f32.mrb[0].mxu0
        %1205 = vmatprep.mubr.f32.mxu0 0.0
        %v1206 = vand.u32 %v613, 4294901760
        %v1207 = vsub.f32 %v613, %v1206
        %1208 = vmatmul.mubr.f32.gmra.mrb[0].mxu0 %v1207
        %v1209 = vpop.f32.mrb[0].mxu0
        %v1210 = vadd.f32 %v1025, %v1209
        %v1211 = vpop.f32.mrb[0].mxu0
        %1212 = vdwg.mxu0
        %1213 = vmatprep.subr.mxu0 0.0
        %v1214 = vand.u32 %v530, 4294901760
        %1215 = vmatpush1.msra.mxu0 %v1214
        %1216 = vmatprep.subr.mxu0 0.0
        %v1217 = vand.u32 %v531, 4294901760
        %1218 = vmatpush1.msra.mxu0 %v1217
        %1219 = vmatprep.subr.mxu0 0.0
        %v1220 = vand.u32 %v532, 4294901760
        %1221 = vmatpush1.msra.mxu0 %v1220
        %1222 = vmatprep.subr.mxu0 0.0
        %v1223 = vand.u32 %v616, 4294901760
        %1224 = vmatpush1.msra.mxu0 %v1223
        %1225 = vmatprep.subr.mxu0 0.0
        %1226 = vmatpush1.msra.mxu0 0.0
        %1227 = vmatprep.subr.mxu0 0.0
        %1228 = vmatpush1.msra.mxu0 0.0
        %1229 = vmatprep.subr.mxu0 0.0
        %1230 = vmatpush1.msra.mxu0 0.0
        %1231 = vmatprep.subr.mxu0 0.0
        %1232 = vmatpush1.msra.mxu0 0.0
        %1233 = vmatprep.subr.mxu0 0.0
        %1234 = vmatpush1.msra.mxu0 0.0
        %1235 = vmatprep.subr.mxu0 0.0
        %1236 = vmatpush1.msra.mxu0 0.0
        %1237 = vmatprep.subr.mxu0 0.0
        %1238 = vmatpush1.msra.mxu0 0.0
        %1239 = vmatprep.subr.mxu0 0.0
        %1240 = vmatpush1.msra.mxu0 0.0
        %1241 = vmatprep.subr.mxu0 0.0
        %1242 = vmatpush1.msra.mxu0 0.0
        %1243 = vmatprep.subr.mxu0 0.0
        %1244 = vmatpush1.msra.mxu0 0.0
        %1245 = vmatprep.subr.mxu0 0.0
        %1246 = vmatpush1.msra.mxu0 0.0
        %1247 = vmatprep.subr.mxu0 0.0
        %1248 = vmatpush1.msra.mxu0 0.0
        %1249 = vmatprep.subr.mxu0 0.0
        %1250 = vmatpush1.msra.mxu0 0.0
        %1251 = vmatprep.subr.mxu0 0.0
        %1252 = vmatpush1.msra.mxu0 0.0
        %1253 = vmatprep.subr.mxu0 0.0
        %1254 = vmatpush1.msra.mxu0 0.0
        %1255 = vmatprep.subr.mxu0 0.0
        %1256 = vmatpush1.msra.mxu0 0.0
        %1257 = vmatprep.subr.mxu0 0.0
        %1258 = vmatpush1.msra.mxu0 0.0
        %1259 = vmatprep.subr.mxu0 0.0
        %1260 = vmatpush1.msra.mxu0 0.0
        %1261 = vmatprep.subr.mxu0 0.0
        %1262 = vmatpush1.msra.mxu0 0.0
        %1263 = vmatprep.subr.mxu0 0.0
        %1264 = vmatpush1.msra.mxu0 0.0
        %1265 = vmatprep.subr.mxu0 0.0
        %1266 = vmatpush1.msra.mxu0 0.0
        %1267 = vmatprep.subr.mxu0 0.0
        %1268 = vmatpush1.msra.mxu0 0.0
        %1269 = vmatprep.subr.mxu0 0.0
        %1270 = vmatpush1.msra.mxu0 0.0
        %1271 = vmatprep.subr.mxu0 0.0
        %1272 = vmatpush1.msra.mxu0 0.0
        %1273 = vmatprep.subr.mxu0 0.0
        %1274 = vmatpush1.msra.mxu0 0.0
        %1275 = vmatprep.subr.mxu0 0.0
        %1276 = vmatpush1.msra.mxu0 0.0
        %1277 = vmatprep.subr.mxu0 0.0
        %1278 = vmatpush1.msra.mxu0 0.0
        %1279 = vmatprep.subr.mxu0 0.0
        %1280 = vmatpush1.msra.mxu0 0.0
        %1281 = vmatprep.mubr.f32.mxu0 0.0
        %v1282 = vand.u32 %v568, 4294901760
        %v1283 = vsub.f32 %v568, %v1282
        %v1284 = vand.u32 %v1283, 4294901760
        %1285 = vmatmul.mubr.f32.gmra.mrb[0].mxu0 %v1284
        %v1286 = vpop.f32.mrb[0].mxu0
        %v1287 = vadd.f32 %v1105, %v1286
        %v1288 = vpop.f32.mrb[0].mxu0
        %1289 = vmatprep.mubr.f32.mxu0 0.0
        %v1290 = vand.u32 %v571, 4294901760
        %v1291 = vsub.f32 %v571, %v1290
        %v1292 = vand.u32 %v1291, 4294901760
        %1293 = vmatmul.mubr.f32.gmra.mrb[0].mxu0 %v1292
        %v1294 = vpop.f32.mrb[0].mxu0
        %v1295 = vadd.f32 %v1112, %v1294
        %v1296 = vpop.f32.mrb[0].mxu0
        %1297 = vmatprep.mubr.f32.mxu0 0.0
        %v1298 = vand.u32 %v574, 4294901760
        %v1299 = vsub.f32 %v574, %v1298
        %v1300 = vand.u32 %v1299, 4294901760
        %1301 = vmatmul.mubr.f32.gmra.mrb[0].mxu0 %v1300
        %v1302 = vpop.f32.mrb[0].mxu0
        %v1303 = vadd.f32 %v1119, %v1302
        %v1304 = vpop.f32.mrb[0].mxu0
        %1305 = vmatprep.mubr.f32.mxu0 0.0
        %v1306 = vand.u32 %v577, 4294901760
        %v1307 = vsub.f32 %v577, %v1306
        %v1308 = vand.u32 %v1307, 4294901760
        %1309 = vmatmul.mubr.f32.gmra.mrb[0].mxu0 %v1308
        %v1310 = vpop.f32.mrb[0].mxu0
        %v1311 = vadd.f32 %v1126, %v1310
        %v1312 = vpop.f32.mrb[0].mxu0
        %1313 = vmatprep.mubr.f32.mxu0 0.0
        %v1314 = vand.u32 %v580, 4294901760
        %v1315 = vsub.f32 %v580, %v1314
        %v1316 = vand.u32 %v1315, 4294901760
        %1317 = vmatmul.mubr.f32.gmra.mrb[0].mxu0 %v1316
        %v1318 = vpop.f32.mrb[0].mxu0
        %v1319 = vadd.f32 %v1133, %v1318
        %v1320 = vpop.f32.mrb[0].mxu0
        %1321 = vmatprep.mubr.f32.mxu0 0.0
        %v1322 = vand.u32 %v583, 4294901760
        %v1323 = vsub.f32 %v583, %v1322
        %v1324 = vand.u32 %v1323, 4294901760
        %1325 = vmatmul.mubr.f32.gmra.mrb[0].mxu0 %v1324
        %v1326 = vpop.f32.mrb[0].mxu0
        %v1327 = vadd.f32 %v1140, %v1326
        %v1328 = vpop.f32.mrb[0].mxu0
        %1329 = vmatprep.mubr.f32.mxu0 0.0
        %v1330 = vand.u32 %v586, 4294901760
        %v1331 = vsub.f32 %v586, %v1330
        %v1332 = vand.u32 %v1331, 4294901760
        %1333 = vmatmul.mubr.f32.gmra.mrb[0].mxu0 %v1332
        %v1334 = vpop.f32.mrb[0].mxu0
        %v1335 = vadd.f32 %v1147, %v1334
        %v1336 = vpop.f32.mrb[0].mxu0
        %1337 = vmatprep.mubr.f32.mxu0 0.0
        %v1338 = vand.u32 %v589, 4294901760
        %v1339 = vsub.f32 %v589, %v1338
        %v1340 = vand.u32 %v1339, 4294901760
        %1341 = vmatmul.mubr.f32.gmra.mrb[0].mxu0 %v1340
        %v1342 = vpop.f32.mrb[0].mxu0
        %v1343 = vadd.f32 %v1154, %v1342
        %v1344 = vpop.f32.mrb[0].mxu0
        %1345 = vmatprep.mubr.f32.mxu0 0.0
        %v1346 = vand.u32 %v592, 4294901760
        %v1347 = vsub.f32 %v592, %v1346
        %v1348 = vand.u32 %v1347, 4294901760
        %1349 = vmatmul.mubr.f32.gmra.mrb[0].mxu0 %v1348
        %v1350 = vpop.f32.mrb[0].mxu0
        %v1351 = vadd.f32 %v1161, %v1350
        %v1352 = vpop.f32.mrb[0].mxu0
        %1353 = vmatprep.mubr.f32.mxu0 0.0
        %v1354 = vand.u32 %v595, 4294901760
        %v1355 = vsub.f32 %v595, %v1354
        %v1356 = vand.u32 %v1355, 4294901760
        %1357 = vmatmul.mubr.f32.gmra.mrb[0].mxu0 %v1356
        %v1358 = vpop.f32.mrb[0].mxu0
        %v1359 = vadd.f32 %v1168, %v1358
        %v1360 = vpop.f32.mrb[0].mxu0
        %1361 = vmatprep.mubr.f32.mxu0 0.0
        %v1362 = vand.u32 %v598, 4294901760
        %v1363 = vsub.f32 %v598, %v1362
        %v1364 = vand.u32 %v1363, 4294901760
        %1365 = vmatmul.mubr.f32.gmra.mrb[0].mxu0 %v1364
        %v1366 = vpop.f32.mrb[0].mxu0
        %v1367 = vadd.f32 %v1175, %v1366
        %v1368 = vpop.f32.mrb[0].mxu0
        %1369 = vmatprep.mubr.f32.mxu0 0.0
        %v1370 = vand.u32 %v601, 4294901760
        %v1371 = vsub.f32 %v601, %v1370
        %v1372 = vand.u32 %v1371, 4294901760
        %1373 = vmatmul.mubr.f32.gmra.mrb[0].mxu0 %v1372
        %v1374 = vpop.f32.mrb[0].mxu0
        %v1375 = vadd.f32 %v1182, %v1374
        %v1376 = vpop.f32.mrb[0].mxu0
        %1377 = vmatprep.mubr.f32.mxu0 0.0
        %v1378 = vand.u32 %v604, 4294901760
        %v1379 = vsub.f32 %v604, %v1378
        %v1380 = vand.u32 %v1379, 4294901760
        %1381 = vmatmul.mubr.f32.gmra.mrb[0].mxu0 %v1380
        %v1382 = vpop.f32.mrb[0].mxu0
        %v1383 = vadd.f32 %v1189, %v1382
        %v1384 = vpop.f32.mrb[0].mxu0
        %1385 = vmatprep.mubr.f32.mxu0 0.0
        %v1386 = vand.u32 %v607, 4294901760
        %v1387 = vsub.f32 %v607, %v1386
        %v1388 = vand.u32 %v1387, 4294901760
        %1389 = vmatmul.mubr.f32.gmra.mrb[0].mxu0 %v1388
        %v1390 = vpop.f32.mrb[0].mxu0
        %v1391 = vadd.f32 %v1196, %v1390
        %v1392 = vpop.f32.mrb[0].mxu0
        %1393 = vmatprep.mubr.f32.mxu0 0.0
        %v1394 = vand.u32 %v610, 4294901760
        %v1395 = vsub.f32 %v610, %v1394
        %v1396 = vand.u32 %v1395, 4294901760
        %1397 = vmatmul.mubr.f32.gmra.mrb[0].mxu0 %v1396
        %v1398 = vpop.f32.mrb[0].mxu0
        %v1399 = vadd.f32 %v1203, %v1398
        %v1400 = vpop.f32.mrb[0].mxu0
        %1401 = vmatprep.mubr.f32.mxu0 0.0
        %v1402 = vand.u32 %v613, 4294901760
        %v1403 = vsub.f32 %v613, %v1402
        %v1404 = vand.u32 %v1403, 4294901760
        %1405 = vmatmul.mubr.f32.gmra.mrb[0].mxu0 %v1404
        %v1406 = vpop.f32.mrb[0].mxu0
        %v1407 = vadd.f32 %v1210, %v1406
        %v1408 = vpop.f32.mrb[0].mxu0
        %1409 = vdwg.mxu0
        %1410 = vmatprep.subr.mxu0 0.0
        %v1411 = vand.u32 %v530, 4294901760
        %v1412 = vsub.f32 %v530, %v1411
        %v1413 = vand.u32 %v1412, 4294901760
        %1414 = vmatpush1.msra.mxu0 %v1413
        %1415 = vmatprep.subr.mxu0 0.0
        %v1416 = vand.u32 %v531, 4294901760
        %v1417 = vsub.f32 %v531, %v1416
        %v1418 = vand.u32 %v1417, 4294901760
        %1419 = vmatpush1.msra.mxu0 %v1418
        %1420 = vmatprep.subr.mxu0 0.0
        %v1421 = vand.u32 %v532, 4294901760
        %v1422 = vsub.f32 %v532, %v1421
        %v1423 = vand.u32 %v1422, 4294901760
        %1424 = vmatpush1.msra.mxu0 %v1423
        %1425 = vmatprep.subr.mxu0 0.0
        %v1426 = vand.u32 %v616, 4294901760
        %v1427 = vsub.f32 %v616, %v1426
        %v1428 = vand.u32 %v1427, 4294901760
        %1429 = vmatpush1.msra.mxu0 %v1428
        %1430 = vmatprep.subr.mxu0 0.0
        %1431 = vmatpush1.msra.mxu0 0.0
        %1432 = vmatprep.subr.mxu0 0.0
        %1433 = vmatpush1.msra.mxu0 0.0
        %1434 = vmatprep.subr.mxu0 0.0
        %1435 = vmatpush1.msra.mxu0 0.0
        %1436 = vmatprep.subr.mxu0 0.0
        %1437 = vmatpush1.msra.mxu0 0.0
        %1438 = vmatprep.subr.mxu0 0.0
        %1439 = vmatpush1.msra.mxu0 0.0
        %1440 = vmatprep.subr.mxu0 0.0
        %1441 = vmatpush1.msra.mxu0 0.0
        %1442 = vmatprep.subr.mxu0 0.0
        %1443 = vmatpush1.msra.mxu0 0.0
        %1444 = vmatprep.subr.mxu0 0.0
        %1445 = vmatpush1.msra.mxu0 0.0
        %1446 = vmatprep.subr.mxu0 0.0
        %1447 = vmatpush1.msra.mxu0 0.0
        %1448 = vmatprep.subr.mxu0 0.0
        %1449 = vmatpush1.msra.mxu0 0.0
        %1450 = vmatprep.subr.mxu0 0.0
        %1451 = vmatpush1.msra.mxu0 0.0
        %1452 = vmatprep.subr.mxu0 0.0
        %1453 = vmatpush1.msra.mxu0 0.0
        %1454 = vmatprep.subr.mxu0 0.0
        %1455 = vmatpush1.msra.mxu0 0.0
        %1456 = vmatprep.subr.mxu0 0.0
        %1457 = vmatpush1.msra.mxu0 0.0
        %1458 = vmatprep.subr.mxu0 0.0
        %1459 = vmatpush1.msra.mxu0 0.0
        %1460 = vmatprep.subr.mxu0 0.0
        %1461 = vmatpush1.msra.mxu0 0.0
        %1462 = vmatprep.subr.mxu0 0.0
        %1463 = vmatpush1.msra.mxu0 0.0
        %1464 = vmatprep.subr.mxu0 0.0
        %1465 = vmatpush1.msra.mxu0 0.0
        %1466 = vmatprep.subr.mxu0 0.0
        %1467 = vmatpush1.msra.mxu0 0.0
        %1468 = vmatprep.subr.mxu0 0.0
        %1469 = vmatpush1.msra.mxu0 0.0
        %1470 = vmatprep.subr.mxu0 0.0
        %1471 = vmatpush1.msra.mxu0 0.0
        %1472 = vmatprep.subr.mxu0 0.0
        %1473 = vmatpush1.msra.mxu0 0.0
        %1474 = vmatprep.subr.mxu0 0.0
        %1475 = vmatpush1.msra.mxu0 0.0
        %1476 = vmatprep.subr.mxu0 0.0
        %1477 = vmatpush1.msra.mxu0 0.0
        %1478 = vmatprep.subr.mxu0 0.0
        %1479 = vmatpush1.msra.mxu0 0.0
        %1480 = vmatprep.subr.mxu0 0.0
        %1481 = vmatpush1.msra.mxu0 0.0
        %1482 = vmatprep.subr.mxu0 0.0
        %1483 = vmatpush1.msra.mxu0 0.0
        %1484 = vmatprep.subr.mxu0 0.0
        %1485 = vmatpush1.msra.mxu0 0.0
        %1486 = vmatprep.mubr.f32.mxu0 0.0
        %v1487 = vand.u32 %v568, 4294901760
        %1488 = vmatmul.mubr.f32.gmra.mrb[0].mxu0 %v1487
        %v1489 = vpop.f32.mrb[0].mxu0
        %v1490 = vadd.f32 %v1287, %v1489
        %v1491 = vpop.f32.mrb[0].mxu0
        %1492 = vmatprep.mubr.f32.mxu0 0.0
        %v1493 = vand.u32 %v571, 4294901760
        %1494 = vmatmul.mubr.f32.gmra.mrb[0].mxu0 %v1493
        %v1495 = vpop.f32.mrb[0].mxu0
        %v1496 = vadd.f32 %v1295, %v1495
        %v1497 = vpop.f32.mrb[0].mxu0
        %1498 = vmatprep.mubr.f32.mxu0 0.0
        %v1499 = vand.u32 %v574, 4294901760
        %1500 = vmatmul.mubr.f32.gmra.mrb[0].mxu0 %v1499
        %v1501 = vpop.f32.mrb[0].mxu0
        %v1502 = vadd.f32 %v1303, %v1501
        %v1503 = vpop.f32.mrb[0].mxu0
        %1504 = vmatprep.mubr.f32.mxu0 0.0
        %v1505 = vand.u32 %v577, 4294901760
        %1506 = vmatmul.mubr.f32.gmra.mrb[0].mxu0 %v1505
        %v1507 = vpop.f32.mrb[0].mxu0
        %v1508 = vadd.f32 %v1311, %v1507
        %v1509 = vpop.f32.mrb[0].mxu0
        %1510 = vmatprep.mubr.f32.mxu0 0.0
        %v1511 = vand.u32 %v580, 4294901760
        %1512 = vmatmul.mubr.f32.gmra.mrb[0].mxu0 %v1511
        %v1513 = vpop.f32.mrb[0].mxu0
        %v1514 = vadd.f32 %v1319, %v1513
        %v1515 = vpop.f32.mrb[0].mxu0
        %1516 = vmatprep.mubr.f32.mxu0 0.0
        %v1517 = vand.u32 %v583, 4294901760
        %1518 = vmatmul.mubr.f32.gmra.mrb[0].mxu0 %v1517
        %v1519 = vpop.f32.mrb[0].mxu0
        %v1520 = vadd.f32 %v1327, %v1519
        %v1521 = vpop.f32.mrb[0].mxu0
        %1522 = vmatprep.mubr.f32.mxu0 0.0
        %v1523 = vand.u32 %v586, 4294901760
        %1524 = vmatmul.mubr.f32.gmra.mrb[0].mxu0 %v1523
        %v1525 = vpop.f32.mrb[0].mxu0
        %v1526 = vadd.f32 %v1335, %v1525
        %v1527 = vpop.f32.mrb[0].mxu0
        %1528 = vmatprep.mubr.f32.mxu0 0.0
        %v1529 = vand.u32 %v589, 4294901760
        %1530 = vmatmul.mubr.f32.gmra.mrb[0].mxu0 %v1529
        %v1531 = vpop.f32.mrb[0].mxu0
        %v1532 = vadd.f32 %v1343, %v1531
        %v1533 = vpop.f32.mrb[0].mxu0
        %1534 = vmatprep.mubr.f32.mxu0 0.0
        %v1535 = vand.u32 %v592, 4294901760
        %1536 = vmatmul.mubr.f32.gmra.mrb[0].mxu0 %v1535
        %v1537 = vpop.f32.mrb[0].mxu0
        %v1538 = vadd.f32 %v1351, %v1537
        %v1539 = vpop.f32.mrb[0].mxu0
        %1540 = vmatprep.mubr.f32.mxu0 0.0
        %v1541 = vand.u32 %v595, 4294901760
        %1542 = vmatmul.mubr.f32.gmra.mrb[0].mxu0 %v1541
        %v1543 = vpop.f32.mrb[0].mxu0
        %v1544 = vadd.f32 %v1359, %v1543
        %v1545 = vpop.f32.mrb[0].mxu0
        %1546 = vmatprep.mubr.f32.mxu0 0.0
        %v1547 = vand.u32 %v598, 4294901760
        %1548 = vmatmul.mubr.f32.gmra.mrb[0].mxu0 %v1547
        %v1549 = vpop.f32.mrb[0].mxu0
        %v1550 = vadd.f32 %v1367, %v1549
        %v1551 = vpop.f32.mrb[0].mxu0
        %1552 = vmatprep.mubr.f32.mxu0 0.0
        %v1553 = vand.u32 %v601, 4294901760
        %1554 = vmatmul.mubr.f32.gmra.mrb[0].mxu0 %v1553
        %v1555 = vpop.f32.mrb[0].mxu0
        %v1556 = vadd.f32 %v1375, %v1555
        %v1557 = vpop.f32.mrb[0].mxu0
        %1558 = vmatprep.mubr.f32.mxu0 0.0
        %v1559 = vand.u32 %v604, 4294901760
        %1560 = vmatmul.mubr.f32.gmra.mrb[0].mxu0 %v1559
        %v1561 = vpop.f32.mrb[0].mxu0
        %v1562 = vadd.f32 %v1383, %v1561
        %v1563 = vpop.f32.mrb[0].mxu0
        %1564 = vmatprep.mubr.f32.mxu0 0.0
        %v1565 = vand.u32 %v607, 4294901760
        %1566 = vmatmul.mubr.f32.gmra.mrb[0].mxu0 %v1565
        %v1567 = vpop.f32.mrb[0].mxu0
        %v1568 = vadd.f32 %v1391, %v1567
        %v1569 = vpop.f32.mrb[0].mxu0
        %1570 = vmatprep.mubr.f32.mxu0 0.0
        %v1571 = vand.u32 %v610, 4294901760
        %1572 = vmatmul.mubr.f32.gmra.mrb[0].mxu0 %v1571
        %v1573 = vpop.f32.mrb[0].mxu0
        %v1574 = vadd.f32 %v1399, %v1573
        %v1575 = vpop.f32.mrb[0].mxu0
        %1576 = vmatprep.mubr.f32.mxu0 0.0
        %v1577 = vand.u32 %v613, 4294901760
        %1578 = vmatmul.mubr.f32.gmra.mrb[0].mxu0 %v1577
        %v1579 = vpop.f32.mrb[0].mxu0
        %v1580 = vadd.f32 %v1407, %v1579
        %v1581 = vpop.f32.mrb[0].mxu0
        %1582 = vdwg.mxu0
        %1583 = vmatprep.subr.mxu0 0.0
        %v1584 = vand.u32 %v530, 4294901760
        %1585 = vmatpush1.msra.mxu0 %v1584
        %1586 = vmatprep.subr.mxu0 0.0
        %v1587 = vand.u32 %v531, 4294901760
        %1588 = vmatpush1.msra.mxu0 %v1587
        %1589 = vmatprep.subr.mxu0 0.0
        %v1590 = vand.u32 %v532, 4294901760
        %1591 = vmatpush1.msra.mxu0 %v1590
        %1592 = vmatprep.subr.mxu0 0.0
        %v1593 = vand.u32 %v616, 4294901760
        %1594 = vmatpush1.msra.mxu0 %v1593
        %1595 = vmatprep.subr.mxu0 0.0
        %1596 = vmatpush1.msra.mxu0 0.0
        %1597 = vmatprep.subr.mxu0 0.0
        %1598 = vmatpush1.msra.mxu0 0.0
        %1599 = vmatprep.subr.mxu0 0.0
        %1600 = vmatpush1.msra.mxu0 0.0
        %1601 = vmatprep.subr.mxu0 0.0
        %1602 = vmatpush1.msra.mxu0 0.0
        %1603 = vmatprep.subr.mxu0 0.0
        %1604 = vmatpush1.msra.mxu0 0.0
        %1605 = vmatprep.subr.mxu0 0.0
        %1606 = vmatpush1.msra.mxu0 0.0
        %1607 = vmatprep.subr.mxu0 0.0
        %1608 = vmatpush1.msra.mxu0 0.0
        %1609 = vmatprep.subr.mxu0 0.0
        %1610 = vmatpush1.msra.mxu0 0.0
        %1611 = vmatprep.subr.mxu0 0.0
        %1612 = vmatpush1.msra.mxu0 0.0
        %1613 = vmatprep.subr.mxu0 0.0
        %1614 = vmatpush1.msra.mxu0 0.0
        %1615 = vmatprep.subr.mxu0 0.0
        %1616 = vmatpush1.msra.mxu0 0.0
        %1617 = vmatprep.subr.mxu0 0.0
        %1618 = vmatpush1.msra.mxu0 0.0
        %1619 = vmatprep.subr.mxu0 0.0
        %1620 = vmatpush1.msra.mxu0 0.0
        %1621 = vmatprep.subr.mxu0 0.0
        %1622 = vmatpush1.msra.mxu0 0.0
        %1623 = vmatprep.subr.mxu0 0.0
        %1624 = vmatpush1.msra.mxu0 0.0
        %1625 = vmatprep.subr.mxu0 0.0
        %1626 = vmatpush1.msra.mxu0 0.0
        %1627 = vmatprep.subr.mxu0 0.0
        %1628 = vmatpush1.msra.mxu0 0.0
        %1629 = vmatprep.subr.mxu0 0.0
        %1630 = vmatpush1.msra.mxu0 0.0
        %1631 = vmatprep.subr.mxu0 0.0
        %1632 = vmatpush1.msra.mxu0 0.0
        %1633 = vmatprep.subr.mxu0 0.0
        %1634 = vmatpush1.msra.mxu0 0.0
        %1635 = vmatprep.subr.mxu0 0.0
        %1636 = vmatpush1.msra.mxu0 0.0
        %1637 = vmatprep.subr.mxu0 0.0
        %1638 = vmatpush1.msra.mxu0 0.0
        %1639 = vmatprep.subr.mxu0 0.0
        %1640 = vmatpush1.msra.mxu0 0.0
        %1641 = vmatprep.subr.mxu0 0.0
        %1642 = vmatpush1.msra.mxu0 0.0
        %1643 = vmatprep.subr.mxu0 0.0
        %1644 = vmatpush1.msra.mxu0 0.0
        %1645 = vmatprep.subr.mxu0 0.0
        %1646 = vmatpush1.msra.mxu0 0.0
        %1647 = vmatprep.subr.mxu0 0.0
        %1648 = vmatpush1.msra.mxu0 0.0
        %1649 = vmatprep.subr.mxu0 0.0
        %1650 = vmatpush1.msra.mxu0 0.0
        %1651 = vmatprep.mubr.f32.mxu0 0.0
        %v1652 = vand.u32 %v568, 4294901760
        %1653 = vmatmul.mubr.f32.gmra.mrb[0].mxu0 %v1652
        %v1654 = vpop.f32.mrb[0].mxu0
        %v1655 = vadd.f32 %v1490, %v1654
        %v1656 = vpop.f32.mrb[0].mxu0
        %1657 = vmatprep.mubr.f32.mxu0 0.0
        %v1658 = vand.u32 %v571, 4294901760
        %1659 = vmatmul.mubr.f32.gmra.mrb[0].mxu0 %v1658
        %v1660 = vpop.f32.mrb[0].mxu0
        %v1661 = vadd.f32 %v1496, %v1660
        %v1662 = vpop.f32.mrb[0].mxu0
        %1663 = vmatprep.mubr.f32.mxu0 0.0
        %v1664 = vand.u32 %v574, 4294901760
        %1665 = vmatmul.mubr.f32.gmra.mrb[0].mxu0 %v1664
        %v1666 = vpop.f32.mrb[0].mxu0
        %v1667 = vadd.f32 %v1502, %v1666
        %v1668 = vpop.f32.mrb[0].mxu0
        %1669 = vmatprep.mubr.f32.mxu0 0.0
        %v1670 = vand.u32 %v577, 4294901760
        %1671 = vmatmul.mubr.f32.gmra.mrb[0].mxu0 %v1670
        %v1672 = vpop.f32.mrb[0].mxu0
        %v1673 = vadd.f32 %v1508, %v1672
        %v1674 = vpop.f32.mrb[0].mxu0
        %1675 = vmatprep.mubr.f32.mxu0 0.0
        %v1676 = vand.u32 %v580, 4294901760
        %1677 = vmatmul.mubr.f32.gmra.mrb[0].mxu0 %v1676
        %v1678 = vpop.f32.mrb[0].mxu0
        %v1679 = vadd.f32 %v1514, %v1678
        %v1680 = vpop.f32.mrb[0].mxu0
        %1681 = vmatprep.mubr.f32.mxu0 0.0
        %v1682 = vand.u32 %v583, 4294901760
        %1683 = vmatmul.mubr.f32.gmra.mrb[0].mxu0 %v1682
        %v1684 = vpop.f32.mrb[0].mxu0
        %v1685 = vadd.f32 %v1520, %v1684
        %v1686 = vpop.f32.mrb[0].mxu0
        %1687 = vmatprep.mubr.f32.mxu0 0.0
        %v1688 = vand.u32 %v586, 4294901760
        %1689 = vmatmul.mubr.f32.gmra.mrb[0].mxu0 %v1688
        %v1690 = vpop.f32.mrb[0].mxu0
        %v1691 = vadd.f32 %v1526, %v1690
        %v1692 = vpop.f32.mrb[0].mxu0
        %1693 = vmatprep.mubr.f32.mxu0 0.0
        %v1694 = vand.u32 %v589, 4294901760
        %1695 = vmatmul.mubr.f32.gmra.mrb[0].mxu0 %v1694
        %v1696 = vpop.f32.mrb[0].mxu0
        %v1697 = vadd.f32 %v1532, %v1696
        %v1698 = vpop.f32.mrb[0].mxu0
        %1699 = vmatprep.mubr.f32.mxu0 0.0
        %v1700 = vand.u32 %v592, 4294901760
        %1701 = vmatmul.mubr.f32.gmra.mrb[0].mxu0 %v1700
        %v1702 = vpop.f32.mrb[0].mxu0
        %v1703 = vadd.f32 %v1538, %v1702
        %v1704 = vpop.f32.mrb[0].mxu0
        %1705 = vmatprep.mubr.f32.mxu0 0.0
        %v1706 = vand.u32 %v595, 4294901760
        %1707 = vmatmul.mubr.f32.gmra.mrb[0].mxu0 %v1706
        %v1708 = vpop.f32.mrb[0].mxu0
        %v1709 = vadd.f32 %v1544, %v1708
        %v1710 = vpop.f32.mrb[0].mxu0
        %1711 = vmatprep.mubr.f32.mxu0 0.0
        %v1712 = vand.u32 %v598, 4294901760
        %1713 = vmatmul.mubr.f32.gmra.mrb[0].mxu0 %v1712
        %v1714 = vpop.f32.mrb[0].mxu0
        %v1715 = vadd.f32 %v1550, %v1714
        %v1716 = vpop.f32.mrb[0].mxu0
        %1717 = vmatprep.mubr.f32.mxu0 0.0
        %v1718 = vand.u32 %v601, 4294901760
        %1719 = vmatmul.mubr.f32.gmra.mrb[0].mxu0 %v1718
        %v1720 = vpop.f32.mrb[0].mxu0
        %v1721 = vadd.f32 %v1556, %v1720
        %v1722 = vpop.f32.mrb[0].mxu0
        %1723 = vmatprep.mubr.f32.mxu0 0.0
        %v1724 = vand.u32 %v604, 4294901760
        %1725 = vmatmul.mubr.f32.gmra.mrb[0].mxu0 %v1724
        %v1726 = vpop.f32.mrb[0].mxu0
        %v1727 = vadd.f32 %v1562, %v1726
        %v1728 = vpop.f32.mrb[0].mxu0
        %1729 = vmatprep.mubr.f32.mxu0 0.0
        %v1730 = vand.u32 %v607, 4294901760
        %1731 = vmatmul.mubr.f32.gmra.mrb[0].mxu0 %v1730
        %v1732 = vpop.f32.mrb[0].mxu0
        %v1733 = vadd.f32 %v1568, %v1732
        %v1734 = vpop.f32.mrb[0].mxu0
        %1735 = vmatprep.mubr.f32.mxu0 0.0
        %v1736 = vand.u32 %v610, 4294901760
        %1737 = vmatmul.mubr.f32.gmra.mrb[0].mxu0 %v1736
        %v1738 = vpop.f32.mrb[0].mxu0
        %v1739 = vadd.f32 %v1574, %v1738
        %v1740 = vpop.f32.mrb[0].mxu0
        %1741 = vmatprep.mubr.f32.mxu0 0.0
        %v1742 = vand.u32 %v613, 4294901760
        %1743 = vmatmul.mubr.f32.gmra.mrb[0].mxu0 %v1742
        %v1744 = vpop.f32.mrb[0].mxu0
        %v1745 = vadd.f32 %v1580, %v1744
        %v1746 = vpop.f32.mrb[0].mxu0
        %1747 = vdwg.mxu0
        %1748 = vst.msk [vmem:[%s169] sm:$0xff] %vm566, %v1655
        %1749 = vst.msk [vmem:[%s169 + $0x8] sm:$0xff] %vm566, %v1661
        %1750 = vst.msk [vmem:[%s169 + $0x10] sm:$0xff] %vm566, %v1667
        %1751 = vst.msk [vmem:[%s169 + $0x18] sm:$0xff] %vm566, %v1673
        %1752 = vst.msk [vmem:[%s169 + $0x20] sm:$0xff] %vm566, %v1679
        %1753 = vst.msk [vmem:[%s169 + $0x28] sm:$0xff] %vm566, %v1685
        %1754 = vst.msk [vmem:[%s169 + $0x30] sm:$0xff] %vm566, %v1691
        %1755 = vst.msk [vmem:[%s169 + $0x38] sm:$0xff] %vm566, %v1697
        %1756 = vst.msk [vmem:[%s169 + $0x40] sm:$0xff] %vm566, %v1703
        %1757 = vst.msk [vmem:[%s169 + $0x48] sm:$0xff] %vm566, %v1709
        %1758 = vst.msk [vmem:[%s169 + $0x50] sm:$0xff] %vm566, %v1715
        %1759 = vst.msk [vmem:[%s169 + $0x58] sm:$0xff] %vm566, %v1721
        %1760 = vst.msk [vmem:[%s169 + $0x60] sm:$0xff] %vm566, %v1727
        %1761 = vst.msk [vmem:[%s169 + $0x68] sm:$0xff] %vm566, %v1733
        %1762 = vst.msk [vmem:[%s169 + $0x70] sm:$0xff] %vm566, %v1739
        %1763 = vst.msk [vmem:[%s169 + $0x78] sm:$0xff] %vm566, %v1745
        %s1764 = sand.u32 %s72, 1
        %s1765 = sand.u32 %s72, 1
        %s1766 = smul.addr %s1765, 128
        %s1767 = scalar_lea.vmem [#allocation6], %s1766
        // Predicated region
        $region37: #{tpu_custom_call.1} parent=27 // pred_check
          %p1768 = pneg %p82
        $region38: #{tpu_custom_call.1} parent=27 // pred_check_branch
          %1770 = sbr.rel (%p1768) target = $region40
        $region39: #{tpu_custom_call.1} parent=27 // pred_region
          %s1771 = smul.u32 16, %s17
          %s1772 = ssub.s32 25, %s1771
          %p1773 = scmp.lt.s32.totalorder %s1772, 16
          %s1774 = scalar_select %p1773, %s1772, 16
          %s1775 = smul.u32 128, %s1774
          %p1776 = scmp.ne.s32.totalorder 0, %s1775
          %s1777 = smul.addr %s1771, 8
          %s1778 = scalar_lea.vmem %s2, %s1777
          // Predicated region
          $region41: #{tpu_custom_call.1} parent=39 // pred_check
            %p1779 = pneg %p1776
          $region42: #{tpu_custom_call.1} parent=39 // pred_check_branch
            %1781 = sbr.rel (%p1779) target = $region44
          $region43: #{tpu_custom_call.1} parent=39 // pred_region
            // Predicated region
            $region45: #{tpu_custom_call.1} parent=43 // pred_check
              _
            $region46: #{tpu_custom_call.1} parent=43 // pred_check_branch
              %1783 = sbr.rel (0) target = $region48
            $region47: #{tpu_custom_call.1} parent=43 // pred_region
              // Predicated region
              $region67: #{tpu_custom_call.1} parent=47 // pred_check
                _
              $region68: #{tpu_custom_call.1} parent=47 // pred_check_branch
                %1862 = sbr.rel (0) target = $region70
              $region69: #{tpu_custom_call.1} parent=47 // pred_region
                %s1863 = sshrl.u32 %s1774, 4
                // While loop
                $region71: #{tpu_custom_call.1} parent=69 // loop_pre_header
                  _
                $region72: #{tpu_custom_call.1} parent=69 // loop_header
                  %s1865 = sphi 0, %s1867
                  %p1866 = scmp.ge.s32.totalorder %s1865, %s1863
                  %s1870 = sphi 0, %s1907
                  %s1871 = sphi %s1767, %s1910
                  %s1872 = sphi %s1778, %s1911
                $region73: #{tpu_custom_call.1} parent=69 // loop_header_branch
                  %1869 = sbr.rel (%p1866) target = $region77
                $region74: #{tpu_custom_call.1} parent=69 // loop_body
                  %v1873 = vld [vmem:[%s1871] sm:$0xff]
                  %1874 = vst [vmem:[%s1872] sm:$0xff] %v1873
                  %v1875 = vld [vmem:[%s1871 + $0x8] sm:$0xff]
                  %1876 = vst [vmem:[%s1872 + $0x8] sm:$0xff] %v1875
                  %v1877 = vld [vmem:[%s1871 + $0x10] sm:$0xff]
                  %1878 = vst [vmem:[%s1872 + $0x10] sm:$0xff] %v1877
                  %v1879 = vld [vmem:[%s1871 + $0x18] sm:$0xff]
                  %1880 = vst [vmem:[%s1872 + $0x18] sm:$0xff] %v1879
                  %v1881 = vld [vmem:[%s1871 + $0x20] sm:$0xff]
                  %1882 = vst [vmem:[%s1872 + $0x20] sm:$0xff] %v1881
                  %v1883 = vld [vmem:[%s1871 + $0x28] sm:$0xff]
                  %1884 = vst [vmem:[%s1872 + $0x28] sm:$0xff] %v1883
                  %v1885 = vld [vmem:[%s1871 + $0x30] sm:$0xff]
                  %1886 = vst [vmem:[%s1872 + $0x30] sm:$0xff] %v1885
                  %v1887 = vld [vmem:[%s1871 + $0x38] sm:$0xff]
                  %1888 = vst [vmem:[%s1872 + $0x38] sm:$0xff] %v1887
                  %v1889 = vld [vmem:[%s1871 + $0x40] sm:$0xff]
                  %1890 = vst [vmem:[%s1872 + $0x40] sm:$0xff] %v1889
                  %v1891 = vld [vmem:[%s1871 + $0x48] sm:$0xff]
                  %1892 = vst [vmem:[%s1872 + $0x48] sm:$0xff] %v1891
                  %v1893 = vld [vmem:[%s1871 + $0x50] sm:$0xff]
                  %1894 = vst [vmem:[%s1872 + $0x50] sm:$0xff] %v1893
                  %v1895 = vld [vmem:[%s1871 + $0x58] sm:$0xff]
                  %1896 = vst [vmem:[%s1872 + $0x58] sm:$0xff] %v1895
                  %v1897 = vld [vmem:[%s1871 + $0x60] sm:$0xff]
                  %1898 = vst [vmem:[%s1872 + $0x60] sm:$0xff] %v1897
                  %v1899 = vld [vmem:[%s1871 + $0x68] sm:$0xff]
                  %1900 = vst [vmem:[%s1872 + $0x68] sm:$0xff] %v1899
                  %v1901 = vld [vmem:[%s1871 + $0x70] sm:$0xff]
                  %1902 = vst [vmem:[%s1872 + $0x70] sm:$0xff] %v1901
                  %v1903 = vld [vmem:[%s1871 + $0x78] sm:$0xff]
                  %1904 = vst [vmem:[%s1872 + $0x78] sm:$0xff] %v1903
                  %s1905 = sadd.s32 1, %s1870
                  %p1906 = scmp.ge.s32.totalorder %s1905, %s1863
                  %s1907 = scalar_select %p1906, 0, %s1905
                  %s1908 = smul.u32 %s1907, 128
                  %s1909 = smul.u32 %s1907, 128
                  %s1910 = scalar_lea.vmem %s1767, %s1908 [#allocation6]
                  %s1911 = scalar_lea.vmem %s1778, %s1909
                $region75: #{tpu_custom_call.1} parent=69 // loop_footer
                  %s1867 = sadd.s32 %s1865, 1
                $region76: #{tpu_custom_call.1} parent=69 // loop_footer_branch
                  %1864 = sbr.rel target = $region72
                $region77: #{tpu_custom_call.1} parent=69 // loop_exit
                  _
                %s1912 = sshrl.u32 %s1774, 4
                %s1913 = sand.u32 %s1774, 15
                %s1914 = smul.u32 %s1912, 16
                %s1915 = smul.u32 8, %s1914
                %s1916 = scalar_lea.vmem %s1767, %s1915 [#allocation6]
                %s1917 = smul.u32 8, %s1914
                %s1918 = scalar_lea.vmem %s1778, %s1917
                // While loop
                $region78: #{tpu_custom_call.1} parent=69 // loop_pre_header
                  _
                $region79: #{tpu_custom_call.1} parent=69 // loop_header
                  %s1920 = sphi 0, %s1922
                  %p1921 = scmp.ge.s32.totalorder %s1920, %s1913
                  %s1925 = sphi 0, %s1932
                  %s1926 = sphi %s1916, %s1935
                  %s1927 = sphi %s1918, %s1936
                $region80: #{tpu_custom_call.1} parent=69 // loop_header_branch
                  %1924 = sbr.rel (%p1921) target = $region84
                $region81: #{tpu_custom_call.1} parent=69 // loop_body
                  %v1928 = vld [vmem:[%s1926] sm:$0xff]
                  %1929 = vst [vmem:[%s1927] sm:$0xff] %v1928
                  %s1930 = sadd.s32 1, %s1925
                  %p1931 = scmp.ge.s32.totalorder %s1930, %s1913
                  %s1932 = scalar_select %p1931, 0, %s1930
                  %s1933 = smul.u32 %s1932, 8
                  %s1934 = smul.u32 %s1932, 8
                  %s1935 = scalar_lea.vmem %s1916, %s1933 [#allocation6]
                  %s1936 = scalar_lea.vmem %s1918, %s1934
                $region82: #{tpu_custom_call.1} parent=69 // loop_footer
                  %s1922 = sadd.s32 %s1920, 1
                $region83: #{tpu_custom_call.1} parent=69 // loop_footer_branch
                  %1919 = sbr.rel target = $region79
                $region84: #{tpu_custom_call.1} parent=69 // loop_exit
                  _
              $region70: #{tpu_custom_call.1} parent=47 // pred_fallthru
                _
              // Predicated region
              $region85: #{tpu_custom_call.1} parent=47 // pred_check
                _
              $region86: #{tpu_custom_call.1} parent=47 // pred_check_branch
                %1938 = sbr.rel target = $region88
              $region87: #{tpu_custom_call.1} parent=47 // pred_region
                _
              $region88: #{tpu_custom_call.1} parent=47 // pred_fallthru
                _
            $region48: #{tpu_custom_call.1} parent=43 // pred_fallthru
              _
            // Predicated region
            $region49: #{tpu_custom_call.1} parent=43 // pred_check
              _
            $region50: #{tpu_custom_call.1} parent=43 // pred_check_branch
              %1785 = sbr.rel target = $region52
            $region51: #{tpu_custom_call.1} parent=43 // pred_region
              %s1787 = sshrl.u32 %s1774, 4
              // While loop
              $region53: #{tpu_custom_call.1} parent=51 // loop_pre_header
                _
              $region54: #{tpu_custom_call.1} parent=51 // loop_header
                %s1789 = sphi 0, %s1791
                %p1790 = scmp.ge.s32.totalorder %s1789, %s1787
                %s1794 = sphi 0, %s1831
                %s1795 = sphi %s1767, %s1834
                %s1796 = sphi %s1778, %s1835
              $region55: #{tpu_custom_call.1} parent=51 // loop_header_branch
                %1793 = sbr.rel (%p1790) target = $region59
              $region56: #{tpu_custom_call.1} parent=51 // loop_body
                %v1797 = vld [vmem:[%s1795] sm:$0xff]
                %1798 = vst [vmem:[%s1796] sm:$0xff] %v1797
                %v1799 = vld [vmem:[%s1795 + $0x8] sm:$0xff]
                %1800 = vst [vmem:[%s1796 + $0x8] sm:$0xff] %v1799
                %v1801 = vld [vmem:[%s1795 + $0x10] sm:$0xff]
                %1802 = vst [vmem:[%s1796 + $0x10] sm:$0xff] %v1801
                %v1803 = vld [vmem:[%s1795 + $0x18] sm:$0xff]
                %1804 = vst [vmem:[%s1796 + $0x18] sm:$0xff] %v1803
                %v1805 = vld [vmem:[%s1795 + $0x20] sm:$0xff]
                %1806 = vst [vmem:[%s1796 + $0x20] sm:$0xff] %v1805
                %v1807 = vld [vmem:[%s1795 + $0x28] sm:$0xff]
                %1808 = vst [vmem:[%s1796 + $0x28] sm:$0xff] %v1807
                %v1809 = vld [vmem:[%s1795 + $0x30] sm:$0xff]
                %1810 = vst [vmem:[%s1796 + $0x30] sm:$0xff] %v1809
                %v1811 = vld [vmem:[%s1795 + $0x38] sm:$0xff]
                %1812 = vst [vmem:[%s1796 + $0x38] sm:$0xff] %v1811
                %v1813 = vld [vmem:[%s1795 + $0x40] sm:$0xff]
                %1814 = vst [vmem:[%s1796 + $0x40] sm:$0xff] %v1813
                %v1815 = vld [vmem:[%s1795 + $0x48] sm:$0xff]
                %1816 = vst [vmem:[%s1796 + $0x48] sm:$0xff] %v1815
                %v1817 = vld [vmem:[%s1795 + $0x50] sm:$0xff]
                %1818 = vst [vmem:[%s1796 + $0x50] sm:$0xff] %v1817
                %v1819 = vld [vmem:[%s1795 + $0x58] sm:$0xff]
                %1820 = vst [vmem:[%s1796 + $0x58] sm:$0xff] %v1819
                %v1821 = vld [vmem:[%s1795 + $0x60] sm:$0xff]
                %1822 = vst [vmem:[%s1796 + $0x60] sm:$0xff] %v1821
                %v1823 = vld [vmem:[%s1795 + $0x68] sm:$0xff]
                %1824 = vst [vmem:[%s1796 + $0x68] sm:$0xff] %v1823
                %v1825 = vld [vmem:[%s1795 + $0x70] sm:$0xff]
                %1826 = vst [vmem:[%s1796 + $0x70] sm:$0xff] %v1825
                %v1827 = vld [vmem:[%s1795 + $0x78] sm:$0xff]
                %1828 = vst [vmem:[%s1796 + $0x78] sm:$0xff] %v1827
                %s1829 = sadd.s32 1, %s1794
                %p1830 = scmp.ge.s32.totalorder %s1829, %s1787
                %s1831 = scalar_select %p1830, 0, %s1829
                %s1832 = smul.u32 %s1831, 128
                %s1833 = smul.u32 %s1831, 128
                %s1834 = scalar_lea.vmem %s1767, %s1832 [#allocation6]
                %s1835 = scalar_lea.vmem %s1778, %s1833
              $region57: #{tpu_custom_call.1} parent=51 // loop_footer
                %s1791 = sadd.s32 %s1789, 1
              $region58: #{tpu_custom_call.1} parent=51 // loop_footer_branch
                %1788 = sbr.rel target = $region54
              $region59: #{tpu_custom_call.1} parent=51 // loop_exit
                _
              %s1836 = sshrl.u32 %s1774, 4
              %s1837 = sand.u32 %s1774, 15
              %s1838 = smul.u32 %s1836, 16
              %s1839 = smul.u32 8, %s1838
              %s1840 = scalar_lea.vmem %s1767, %s1839 [#allocation6]
              %s1841 = smul.u32 8, %s1838
              %s1842 = scalar_lea.vmem %s1778, %s1841
              // While loop
              $region60: #{tpu_custom_call.1} parent=51 // loop_pre_header
                _
              $region61: #{tpu_custom_call.1} parent=51 // loop_header
                %s1844 = sphi 0, %s1846
                %p1845 = scmp.ge.s32.totalorder %s1844, %s1837
                %s1849 = sphi 0, %s1856
                %s1850 = sphi %s1840, %s1859
                %s1851 = sphi %s1842, %s1860
              $region62: #{tpu_custom_call.1} parent=51 // loop_header_branch
                %1848 = sbr.rel (%p1845) target = $region66
              $region63: #{tpu_custom_call.1} parent=51 // loop_body
                %v1852 = vld [vmem:[%s1850] sm:$0xff]
                %1853 = vst [vmem:[%s1851] sm:$0xff] %v1852
                %s1854 = sadd.s32 1, %s1849
                %p1855 = scmp.ge.s32.totalorder %s1854, %s1837
                %s1856 = scalar_select %p1855, 0, %s1854
                %s1857 = smul.u32 %s1856, 8
                %s1858 = smul.u32 %s1856, 8
                %s1859 = scalar_lea.vmem %s1840, %s1857 [#allocation6]
                %s1860 = scalar_lea.vmem %s1842, %s1858
              $region64: #{tpu_custom_call.1} parent=51 // loop_footer
                %s1846 = sadd.s32 %s1844, 1
              $region65: #{tpu_custom_call.1} parent=51 // loop_footer_branch
                %1843 = sbr.rel target = $region61
              $region66: #{tpu_custom_call.1} parent=51 // loop_exit
                _
            $region52: #{tpu_custom_call.1} parent=43 // pred_fallthru
              _
          $region44: #{tpu_custom_call.1} parent=39 // pred_fallthru
            _
          %1939 = vnop
        $region40: #{tpu_custom_call.1} parent=27 // pred_fallthru
          _
      $region28: #{tpu_custom_call.1} parent=5 // pred_fallthru
        _
      %p1940 = scmp.le.s32.totalorder 2, %s12
      // Predicated region
      $region89: #{tpu_custom_call.1} parent=5 // pred_check
        %p1941 = pneg %p1940
      $region90: #{tpu_custom_call.1} parent=5 // pred_check_branch
        %1943 = sbr.rel (%p1941) target = $region92
      $region91: #{tpu_custom_call.1} parent=5 // pred_region
        %s1944 = ssub.s32 %s12, 2
        // Predicated region
        $region93: #{tpu_custom_call.1} parent=91 // pred_check
          %p1945 = pneg %p88
        $region94: #{tpu_custom_call.1} parent=91 // pred_check_branch
          %1947 = sbr.rel (%p1945) target = $region96
        $region95: #{tpu_custom_call.1} parent=91 // pred_region
          %s1948 = sand.u32 %s73, 1
          %s1949 = sand.u32 %s73, 1
          %s1950 = smul.addr %s1949, 128
          %s1951 = scalar_lea.vmem [#allocation6], %s1950
        $region96: #{tpu_custom_call.1} parent=91 // pred_fallthru
          _
      $region92: #{tpu_custom_call.1} parent=5 // pred_fallthru
        _
    $region6: #{tpu_custom_call.1} parent=1 // loop_footer
      %s16 = sadd.s32 1, %s12
    $region7: #{tpu_custom_call.1} parent=1 // loop_footer_branch
      %11 = sbr.rel target = $region3
    $region8: #{tpu_custom_call.1} parent=1 // loop_exit
      _
    %1952 = vsyncpa [#allocation3], 1
    %s1953 = scalar_lea.sflag [#allocation3], 1
    %1954 = vsyncpa %s1953, 1
    %1955 = vsyncpa [#allocation5], 1

</llo_original>
